<compile_context>
chip_gen: v6e
topology: v6e:2x2x1
jax: 0.10.0
libtpu: 0.0.40
codegen_flags: <defaults>
</compile_context>

<pallas_src>
import math
import jax
import jax.numpy as jnp
import numpy as np
from jax.experimental import pallas as pl

B, S, H = 2, 8, 32          # batch, seq_len, hidden_size
NH = 2                      # num_attention_heads
HG = H // 2                 # GraphAttention hidden size (config.hidden_size // 2)
HD = HG // NH               # attention_head_size
I = 64                      # intermediate_size
NUM_LAYERS = 2              # share_params=True -> same params applied NUM_LAYERS times
BS = B * S                  # batch folded into rows inside the kernel
EPS = 1e-12
SCALE = 1.0 / math.sqrt(HD)


def _layer_norm(x, gamma, beta):
    u = jnp.mean(x, axis=-1, keepdims=True)
    d = x - u
    var = jnp.mean(d * d, axis=-1, keepdims=True)
    return gamma * (d * jax.lax.rsqrt(var + EPS)) + beta


def _gelu_tanh(x):
    # tanh-form GELU (EUP tanh); max abs deviation from the reference's exact erf-GELU is ~3e-4.
    c = math.sqrt(2.0 / math.pi)
    return 0.5 * x * (1.0 + jnp.tanh(c * (x + 0.044715 * x * x * x)))


def gat_encoder_kernel(x_ref, gbd_ref,
                       wq_ref, wk_ref, wv_ref,
                       wso_ref, bso_ref, g1_ref, b1_ref,
                       wi_ref, bi_ref, wo_ref, bo_ref, g2_ref, b2_ref,
                       out_ref):
    # ---- load params once; hoist bias / LN-parameter broadcasts out of the fused layer loop ----
    wq, wk, wv = wq_ref[...], wk_ref[...], wv_ref[...]
    wso, wi, wo = wso_ref[...], wi_ref[...], wo_ref[...]
    bso = jnp.broadcast_to(bso_ref[...], (BS, H))
    bi = jnp.broadcast_to(bi_ref[...], (BS, I))
    bo = jnp.broadcast_to(bo_ref[...], (BS, H))
    g1 = jnp.broadcast_to(g1_ref[...], (BS, H))
    b1 = jnp.broadcast_to(b1_ref[...], (BS, H))
    g2 = jnp.broadcast_to(g2_ref[...], (BS, H))
    b2 = jnp.broadcast_to(b2_ref[...], (BS, H))

    # Block-diagonal additive mask (computed once): cross-batch entries and graph-masked entries
    # both become -1e9, exactly reproducing per-batch masked softmax after exp-underflow.
    neg_inf_mask = (1.0 - gbd_ref[...]) * -1e9                     # (BS, BS)

    h = x_ref[...]                                                 # (BS, H)
    for layer in range(NUM_LAYERS):                                # share_params=True: same weights
        # forward GraphAttention (Q/K/V path); attention dropout = identity at inference
        q = jnp.dot(h, wq, preferred_element_type=jnp.float32)     # (BS, HG)
        k = jnp.dot(h, wk, preferred_element_type=jnp.float32)
        v = jnp.dot(h, wv, preferred_element_type=jnp.float32)

        ctx_heads = []
        for hh in range(NH):                                       # static, tiny head count
            sl = slice(hh * HD, (hh + 1) * HD)
            qh, kh, vh = q[:, sl], k[:, sl], v[:, sl]
            scores = jnp.dot(qh, kh.T, preferred_element_type=jnp.float32) * SCALE + neg_inf_mask
            scores = scores - jnp.max(scores, axis=-1, keepdims=True)
            e = jnp.exp(scores)
            probs = e * pl.reciprocal(jnp.sum(e, axis=-1, keepdims=True), approx=True)
            ctx_heads.append(jnp.dot(probs, vh, preferred_element_type=jnp.float32))

        # GATLayer: concat_output = cat([fw_ga_output, fw_ga_output], -1)
        # (bw branch is dead code in the reference) -> build [h0|h1|h0|h1] in one concatenate.
        ctx_dup = jnp.concatenate(ctx_heads + ctx_heads, axis=-1)   # (BS, H)

        # GATSelfOutput: dense(hidden_states) + concat_output -> LayerNorm
        so = jnp.dot(h, wso, preferred_element_type=jnp.float32) + bso
        att = _layer_norm(so + ctx_dup, g1, b1)

        # GATIntermediate: dense -> gelu
        inter = _gelu_tanh(jnp.dot(att, wi, preferred_element_type=jnp.float32) + bi)

        # GATOutput: dense -> + attention_output -> LayerNorm
        o = jnp.dot(inter, wo, preferred_element_type=jnp.float32) + bo
        h = _layer_norm(o + att, g2, b2)

        out_ref[layer] = h.astype(out_ref.dtype)


# Advisory cost estimate (per-layer matmul flops + attention over the block-diag scores).
FLOPS = NUM_LAYERS * (3 * 2 * BS * H * HG          # Q, K, V projections
                      + NH * 4 * BS * BS * HD      # per-head scores + probs@V (block-diagonal)
                      + 2 * BS * H * H             # self-output dense
                      + 2 * BS * H * I             # intermediate dense
                      + 2 * BS * I * H)            # output dense
TRANSCENDENTALS = NUM_LAYERS * (NH * BS * BS + BS * I + NH * BS + 2 * BS)  # exp, tanh, recip, rsqrt


def _full_spec(shape):
    nd = len(shape)
    return pl.BlockSpec(shape, lambda: (0,) * nd)   # grid=() -> index_map takes no args


def gat_encoder(hidden_states, graph_matrix, attention_mask, params, num_layers=NUM_LAYERS):
    # attention_mask is accepted but unused, exactly as in the reference GATLayer.forward.
    del attention_mask
    assert num_layers == NUM_LAYERS, "kernel is specialized for NUM_LAYERS fused shared-param layers"

    x2 = hidden_states.reshape(BS, H)
    # Fold the batch into one block-diagonal adjacency so a single scores matmul covers all batches.
    gbd = jnp.einsum('bij,bc->bicj', graph_matrix.astype(jnp.float32),
                     jnp.eye(B, dtype=jnp.float32)).reshape(BS, BS)

    bytes_accessed = 4 * (x2.size + gbd.size + sum(int(p.size) for p in params)
                          + NUM_LAYERS * BS * H)

    in_specs = [_full_spec((BS, H)), _full_spec((BS, BS))]
    in_specs += [_full_spec(p.shape) for p in params]

    out = pl.pallas_call(
        gat_encoder_kernel,
        out_shape=jax.ShapeDtypeStruct((NUM_LAYERS, BS, H), jnp.float32),
        in_specs=in_specs,
        out_specs=_full_spec((NUM_LAYERS, BS, H)),
        cost_estimate=pl.CostEstimate(flops=FLOPS, transcendentals=TRANSCENDENTALS,
                                      bytes_accessed=bytes_accessed),
    )(x2, gbd, *params)

    out = out.reshape(NUM_LAYERS, B, S, H)
    return [out[l] for l in range(NUM_LAYERS)]


# ---------------- pure-JAX reference (exact erf-GELU / exact softmax, mirrors the PyTorch spec) ----
def _ref_layer(x, g, p):
    wq, wk, wv, wso, bso, g1, b1, wi, bi, wo, bo, g2, b2 = p
    q = (x @ wq).reshape(B, S, NH, HD).transpose(0, 2, 1, 3)
    k = (x @ wk).reshape(B, S, NH, HD).transpose(0, 2, 1, 3)
    v = (x @ wv).reshape(B, S, NH, HD).transpose(0, 2, 1, 3)
    scores = jnp.einsum('bhqd,bhkd->bhqk', q, k) * SCALE
    scores = scores + ((1.0 - g) * -1e9)[:, None]
    probs = jax.nn.softmax(scores, axis=-1)
    ctx = jnp.einsum('bhqk,bhkd->bhqd', probs, v).transpose(0, 2, 1, 3).reshape(B, S, HG)
    concat = jnp.concatenate([ctx, ctx], axis=-1)

    def ln(t, gamma, beta):
        u = t.mean(-1, keepdims=True)
        s = ((t - u) ** 2).mean(-1, keepdims=True)
        return gamma * (t - u) / jnp.sqrt(s + EPS) + beta

    att = ln(x @ wso + bso + concat, g1, b1)
    inter = att @ wi + bi
    inter = inter * 0.5 * (1.0 + jax.scipy.special.erf(inter / math.sqrt(2.0)))
    out = ln(inter @ wo + bo + att, g2, b2)
    return out


def _ref_encoder(x, g, p, num_layers=NUM_LAYERS):
    outs = []
    h = x
    for _ in range(num_layers):
        h = _ref_layer(h, g, p)
        outs.append(h)
    return outs


def make_params(key):
    ks = jax.random.split(key, 9)

    def w(k, din, dout):
        bound = 1.0 / math.sqrt(din)
        return jax.random.uniform(k, (din, dout), jnp.float32, -bound, bound)

    def b(k, din, dout):
        bound = 1.0 / math.sqrt(din)
        return jax.random.uniform(k, (1, dout), jnp.float32, -bound, bound)

    wq, wk, wv = w(ks[0], H, HG), w(ks[1], H, HG), w(ks[2], H, HG)   # query/key/value, bias=False
    wso, bso = w(ks[3], H, H), b(ks[4], H, H)                        # GATSelfOutput dense
    g1, b1 = jnp.ones((1, H), jnp.float32), jnp.zeros((1, H), jnp.float32)
    wi, bi = w(ks[5], H, I), b(ks[6], H, I)                          # GATIntermediate dense
    wo, bo = w(ks[7], I, H), b(ks[8], I, H)                          # GATOutput dense
    g2, b2 = jnp.ones((1, H), jnp.float32), jnp.zeros((1, H), jnp.float32)
    return (wq, wk, wv, wso, bso, g1, b1, wi, bi, wo, bo, g2, b2)


if __name__ == "__main__":
    key = jax.random.PRNGKey(0)
    kx, kg, kp = jax.random.split(key, 3)

    hidden_states = jax.random.normal(kx, (B, S, H), jnp.float32)
    graph_matrix = (jax.random.uniform(kg, (B, S, S)) < 0.4).astype(jnp.float32)
    graph_matrix = jnp.maximum(graph_matrix, jnp.eye(S, dtype=jnp.float32)[None])  # self-loops
    attention_mask = jnp.ones((B, S), jnp.float32)   # unused by the reference layer
    params = make_params(kp)

    outs = gat_encoder(hidden_states, graph_matrix, attention_mask, params)
    outs = [jax.block_until_ready(o) for o in outs]

    # Tolerance covers the documented kernel approximations vs. the exact reference:
    # tanh-GELU (~3e-4 abs) and approx reciprocal in softmax (~2e-4 rel), compounded over 2 layers.
    ref_outs = _ref_encoder(hidden_states, graph_matrix, params)
    for o, r in zip(outs, ref_outs):
        np.testing.assert_allclose(np.asarray(o), np.asarray(r), rtol=5e-3, atol=5e-3)

    print("KERNEL_OK")
</pallas_src>

<mosaic_0001>
module attributes {stable_mosaic.version = 11 : i64} {
  func.func @gat_encoder_kernel(%arg0: memref<16x32xf32, #tpu.memory_space<vmem>>, %arg1: memref<16x16xf32, #tpu.memory_space<vmem>>, %arg2: memref<32x16xf32, #tpu.memory_space<vmem>>, %arg3: memref<32x16xf32, #tpu.memory_space<vmem>>, %arg4: memref<32x16xf32, #tpu.memory_space<vmem>>, %arg5: memref<32x32xf32, #tpu.memory_space<vmem>>, %arg6: memref<1x32xf32, #tpu.memory_space<vmem>>, %arg7: memref<1x32xf32, #tpu.memory_space<vmem>>, %arg8: memref<1x32xf32, #tpu.memory_space<vmem>>, %arg9: memref<32x64xf32, #tpu.memory_space<vmem>>, %arg10: memref<1x64xf32, #tpu.memory_space<vmem>>, %arg11: memref<64x32xf32, #tpu.memory_space<vmem>>, %arg12: memref<1x32xf32, #tpu.memory_space<vmem>>, %arg13: memref<1x32xf32, #tpu.memory_space<vmem>>, %arg14: memref<1x32xf32, #tpu.memory_space<vmem>>, %arg15: memref<2x16x32xf32, #tpu.memory_space<vmem>>) attributes {dimension_semantics = [], scalar_prefetch = 0 : i64, scratch_operands = 0 : i64, tpu.core_type = #tpu.core_type<tc>} {
    %c0 = arith.constant 0 : index
    %c0_0 = arith.constant 0 : index
    %0 = vector.load %arg2[%c0, %c0_0] : memref<32x16xf32, #tpu.memory_space<vmem>>, vector<32x16xf32>
    %c0_1 = arith.constant 0 : index
    %c0_2 = arith.constant 0 : index
    %1 = vector.load %arg3[%c0_1, %c0_2] : memref<32x16xf32, #tpu.memory_space<vmem>>, vector<32x16xf32>
    %c0_3 = arith.constant 0 : index
    %c0_4 = arith.constant 0 : index
    %2 = vector.load %arg4[%c0_3, %c0_4] : memref<32x16xf32, #tpu.memory_space<vmem>>, vector<32x16xf32>
    %c0_5 = arith.constant 0 : index
    %c0_6 = arith.constant 0 : index
    %3 = vector.load %arg5[%c0_5, %c0_6] : memref<32x32xf32, #tpu.memory_space<vmem>>, vector<32x32xf32>
    %c0_7 = arith.constant 0 : index
    %c0_8 = arith.constant 0 : index
    %4 = vector.load %arg9[%c0_7, %c0_8] : memref<32x64xf32, #tpu.memory_space<vmem>>, vector<32x64xf32>
    %c0_9 = arith.constant 0 : index
    %c0_10 = arith.constant 0 : index
    %5 = vector.load %arg11[%c0_9, %c0_10] : memref<64x32xf32, #tpu.memory_space<vmem>>, vector<64x32xf32>
    %c0_11 = arith.constant 0 : index
    %c0_12 = arith.constant 0 : index
    %6 = vector.load %arg6[%c0_11, %c0_12] : memref<1x32xf32, #tpu.memory_space<vmem>>, vector<1x32xf32>
    %7 = vector.shape_cast %6 : vector<1x32xf32> to vector<1x32xf32>
    %8 = vector.broadcast %7 : vector<1x32xf32> to vector<16x32xf32>
    %c0_13 = arith.constant 0 : index
    %c0_14 = arith.constant 0 : index
    %9 = vector.load %arg10[%c0_13, %c0_14] : memref<1x64xf32, #tpu.memory_space<vmem>>, vector<1x64xf32>
    %10 = vector.shape_cast %9 : vector<1x64xf32> to vector<1x64xf32>
    %11 = vector.broadcast %10 : vector<1x64xf32> to vector<16x64xf32>
    %c0_15 = arith.constant 0 : index
    %c0_16 = arith.constant 0 : index
    %12 = vector.load %arg12[%c0_15, %c0_16] : memref<1x32xf32, #tpu.memory_space<vmem>>, vector<1x32xf32>
    %13 = vector.shape_cast %12 : vector<1x32xf32> to vector<1x32xf32>
    %14 = vector.broadcast %13 : vector<1x32xf32> to vector<16x32xf32>
    %c0_17 = arith.constant 0 : index
    %c0_18 = arith.constant 0 : index
    %15 = vector.load %arg7[%c0_17, %c0_18] : memref<1x32xf32, #tpu.memory_space<vmem>>, vector<1x32xf32>
    %16 = vector.shape_cast %15 : vector<1x32xf32> to vector<1x32xf32>
    %17 = vector.broadcast %16 : vector<1x32xf32> to vector<16x32xf32>
    %c0_19 = arith.constant 0 : index
    %c0_20 = arith.constant 0 : index
    %18 = vector.load %arg8[%c0_19, %c0_20] : memref<1x32xf32, #tpu.memory_space<vmem>>, vector<1x32xf32>
    %19 = vector.shape_cast %18 : vector<1x32xf32> to vector<1x32xf32>
    %20 = vector.broadcast %19 : vector<1x32xf32> to vector<16x32xf32>
    %c0_21 = arith.constant 0 : index
    %c0_22 = arith.constant 0 : index
    %21 = vector.load %arg13[%c0_21, %c0_22] : memref<1x32xf32, #tpu.memory_space<vmem>>, vector<1x32xf32>
    %22 = vector.shape_cast %21 : vector<1x32xf32> to vector<1x32xf32>
    %23 = vector.broadcast %22 : vector<1x32xf32> to vector<16x32xf32>
    %c0_23 = arith.constant 0 : index
    %c0_24 = arith.constant 0 : index
    %24 = vector.load %arg14[%c0_23, %c0_24] : memref<1x32xf32, #tpu.memory_space<vmem>>, vector<1x32xf32>
    %25 = vector.shape_cast %24 : vector<1x32xf32> to vector<1x32xf32>
    %26 = vector.broadcast %25 : vector<1x32xf32> to vector<16x32xf32>
    %c0_25 = arith.constant 0 : index
    %c0_26 = arith.constant 0 : index
    %27 = vector.load %arg1[%c0_25, %c0_26] : memref<16x16xf32, #tpu.memory_space<vmem>>, vector<16x16xf32>
    %cst = arith.constant 1.000000e+00 : f32
    %28 = vector.broadcast %cst : f32 to vector<16x16xf32>
    %29 = arith.subf %28, %27 : vector<16x16xf32>
    %cst_27 = arith.constant -1.000000e+09 : f32
    %30 = vector.broadcast %cst_27 : f32 to vector<16x16xf32>
    %31 = arith.mulf %29, %30 : vector<16x16xf32>
    %c0_28 = arith.constant 0 : index
    %c0_29 = arith.constant 0 : index
    %32 = vector.load %arg0[%c0_28, %c0_29] : memref<16x32xf32, #tpu.memory_space<vmem>>, vector<16x32xf32>
    %cst_30 = arith.constant dense<0.000000e+00> : vector<16x16xf32>
    %33 = tpu.matmul %32, %0, %cst_30 {dimension_numbers = #tpu.dot_dimension_numbers<[1], [0], [0], [1], [0, 0, 1, 1], [], []>} : vector<16x32xf32>, vector<32x16xf32>, vector<16x16xf32> -> vector<16x16xf32>
    %cst_31 = arith.constant dense<0.000000e+00> : vector<16x16xf32>
    %34 = tpu.matmul %32, %1, %cst_31 {dimension_numbers = #tpu.dot_dimension_numbers<[1], [0], [0], [1], [0, 0, 1, 1], [], []>} : vector<16x32xf32>, vector<32x16xf32>, vector<16x16xf32> -> vector<16x16xf32>
    %cst_32 = arith.constant dense<0.000000e+00> : vector<16x16xf32>
    %35 = tpu.matmul %32, %2, %cst_32 {dimension_numbers = #tpu.dot_dimension_numbers<[1], [0], [0], [1], [0, 0, 1, 1], [], []>} : vector<16x32xf32>, vector<32x16xf32>, vector<16x16xf32> -> vector<16x16xf32>
    %36 = vector.extract_strided_slice %33 {offsets = [0, 0], sizes = [16, 8], strides = [1, 1]} : vector<16x16xf32> to vector<16x8xf32>
    %37 = vector.extract_strided_slice %34 {offsets = [0, 0], sizes = [16, 8], strides = [1, 1]} : vector<16x16xf32> to vector<16x8xf32>
    %38 = vector.extract_strided_slice %35 {offsets = [0, 0], sizes = [16, 8], strides = [1, 1]} : vector<16x16xf32> to vector<16x8xf32>
    %39 = tpu.transpose %37, [1, 0] : vector<16x8xf32> -> vector<8x16xf32>
    %cst_33 = arith.constant dense<0.000000e+00> : vector<16x16xf32>
    %40 = tpu.matmul %36, %39, %cst_33 {dimension_numbers = #tpu.dot_dimension_numbers<[1], [0], [0], [1], [0, 0, 1, 1], [], []>} : vector<16x8xf32>, vector<8x16xf32>, vector<16x16xf32> -> vector<16x16xf32>
    %cst_34 = arith.constant 0.353553385 : f32
    %41 = vector.broadcast %cst_34 : f32 to vector<16x16xf32>
    %42 = arith.mulf %40, %41 : vector<16x16xf32>
    %43 = arith.addf %42, %31 : vector<16x16xf32>
    %cst_35 = arith.constant dense<0xFF800000> : vector<16xf32>
    %44 = vector.multi_reduction <maximumf>, %43, %cst_35 [1] : vector<16x16xf32> to vector<16xf32>
    %45 = vector.shape_cast %44 : vector<16xf32> to vector<16x1xf32>
    %46 = vector.broadcast %45 : vector<16x1xf32> to vector<16x16xf32>
    %47 = arith.subf %43, %46 : vector<16x16xf32>
    %48 = math.exp %47 : vector<16x16xf32>
    %cst_36 = arith.constant dense<0.000000e+00> : vector<16xf32>
    %49 = vector.multi_reduction <add>, %48, %cst_36 [1] : vector<16x16xf32> to vector<16xf32>
    %50 = vector.shape_cast %49 : vector<16xf32> to vector<16x1xf32>
    %51 = tpu.reciprocal %50 {approx = true} : vector<16x1xf32> -> vector<16x1xf32>
    %52 = vector.broadcast %51 : vector<16x1xf32> to vector<16x16xf32>
    %53 = arith.mulf %48, %52 : vector<16x16xf32>
    %cst_37 = arith.constant dense<0.000000e+00> : vector<16x8xf32>
    %54 = tpu.matmul %53, %38, %cst_37 {dimension_numbers = #tpu.dot_dimension_numbers<[1], [0], [0], [1], [0, 0, 1, 1], [], []>} : vector<16x16xf32>, vector<16x8xf32>, vector<16x8xf32> -> vector<16x8xf32>
    %55 = vector.extract_strided_slice %33 {offsets = [0, 8], sizes = [16, 8], strides = [1, 1]} : vector<16x16xf32> to vector<16x8xf32>
    %56 = vector.extract_strided_slice %34 {offsets = [0, 8], sizes = [16, 8], strides = [1, 1]} : vector<16x16xf32> to vector<16x8xf32>
    %57 = vector.extract_strided_slice %35 {offsets = [0, 8], sizes = [16, 8], strides = [1, 1]} : vector<16x16xf32> to vector<16x8xf32>
    %58 = tpu.transpose %56, [1, 0] : vector<16x8xf32> -> vector<8x16xf32>
    %cst_38 = arith.constant dense<0.000000e+00> : vector<16x16xf32>
    %59 = tpu.matmul %55, %58, %cst_38 {dimension_numbers = #tpu.dot_dimension_numbers<[1], [0], [0], [1], [0, 0, 1, 1], [], []>} : vector<16x8xf32>, vector<8x16xf32>, vector<16x16xf32> -> vector<16x16xf32>
    %cst_39 = arith.constant 0.353553385 : f32
    %60 = vector.broadcast %cst_39 : f32 to vector<16x16xf32>
    %61 = arith.mulf %59, %60 : vector<16x16xf32>
    %62 = arith.addf %61, %31 : vector<16x16xf32>
    %cst_40 = arith.constant dense<0xFF800000> : vector<16xf32>
    %63 = vector.multi_reduction <maximumf>, %62, %cst_40 [1] : vector<16x16xf32> to vector<16xf32>
    %64 = vector.shape_cast %63 : vector<16xf32> to vector<16x1xf32>
    %65 = vector.broadcast %64 : vector<16x1xf32> to vector<16x16xf32>
    %66 = arith.subf %62, %65 : vector<16x16xf32>
    %67 = math.exp %66 : vector<16x16xf32>
    %cst_41 = arith.constant dense<0.000000e+00> : vector<16xf32>
    %68 = vector.multi_reduction <add>, %67, %cst_41 [1] : vector<16x16xf32> to vector<16xf32>
    %69 = vector.shape_cast %68 : vector<16xf32> to vector<16x1xf32>
    %70 = tpu.reciprocal %69 {approx = true} : vector<16x1xf32> -> vector<16x1xf32>
    %71 = vector.broadcast %70 : vector<16x1xf32> to vector<16x16xf32>
    %72 = arith.mulf %67, %71 : vector<16x16xf32>
    %cst_42 = arith.constant dense<0.000000e+00> : vector<16x8xf32>
    %73 = tpu.matmul %72, %57, %cst_42 {dimension_numbers = #tpu.dot_dimension_numbers<[1], [0], [0], [1], [0, 0, 1, 1], [], []>} : vector<16x16xf32>, vector<16x8xf32>, vector<16x8xf32> -> vector<16x8xf32>
    %74 = tpu.concatenate %54, %73, %54, %73 in 1 : vector<16x8xf32>, vector<16x8xf32>, vector<16x8xf32>, vector<16x8xf32> -> vector<16x32xf32>
    %cst_43 = arith.constant dense<0.000000e+00> : vector<16x32xf32>
    %75 = tpu.matmul %32, %3, %cst_43 {dimension_numbers = #tpu.dot_dimension_numbers<[1], [0], [0], [1], [0, 0, 1, 1], [], []>} : vector<16x32xf32>, vector<32x32xf32>, vector<16x32xf32> -> vector<16x32xf32>
    %76 = arith.addf %75, %8 : vector<16x32xf32>
    %77 = arith.addf %76, %74 : vector<16x32xf32>
    %cst_44 = arith.constant dense<0.000000e+00> : vector<16xf32>
    %78 = vector.multi_reduction <add>, %77, %cst_44 [1] : vector<16x32xf32> to vector<16xf32>
    %79 = vector.shape_cast %78 : vector<16xf32> to vector<16x1xf32>
    %cst_45 = arith.constant 3.200000e+01 : f32
    %80 = vector.broadcast %cst_45 : f32 to vector<16x1xf32>
    %81 = arith.divf %79, %80 : vector<16x1xf32>
    %82 = vector.broadcast %81 : vector<16x1xf32> to vector<16x32xf32>
    %83 = arith.subf %77, %82 : vector<16x32xf32>
    %84 = arith.mulf %83, %83 : vector<16x32xf32>
    %cst_46 = arith.constant dense<0.000000e+00> : vector<16xf32>
    %85 = vector.multi_reduction <add>, %84, %cst_46 [1] : vector<16x32xf32> to vector<16xf32>
    %86 = vector.shape_cast %85 : vector<16xf32> to vector<16x1xf32>
    %cst_47 = arith.constant 3.200000e+01 : f32
    %87 = vector.broadcast %cst_47 : f32 to vector<16x1xf32>
    %88 = arith.divf %86, %87 : vector<16x1xf32>
    %cst_48 = arith.constant 9.99999996E-13 : f32
    %89 = vector.broadcast %cst_48 : f32 to vector<16x1xf32>
    %90 = arith.addf %88, %89 : vector<16x1xf32>
    %91 = math.rsqrt %90 : vector<16x1xf32>
    %92 = vector.broadcast %91 : vector<16x1xf32> to vector<16x32xf32>
    %93 = arith.mulf %83, %92 : vector<16x32xf32>
    %94 = arith.mulf %17, %93 : vector<16x32xf32>
    %95 = arith.addf %94, %20 : vector<16x32xf32>
    %cst_49 = arith.constant dense<0.000000e+00> : vector<16x64xf32>
    %96 = tpu.matmul %95, %4, %cst_49 {dimension_numbers = #tpu.dot_dimension_numbers<[1], [0], [0], [1], [0, 0, 1, 1], [], []>} : vector<16x32xf32>, vector<32x64xf32>, vector<16x64xf32> -> vector<16x64xf32>
    %97 = arith.addf %96, %11 : vector<16x64xf32>
    %cst_50 = arith.constant 5.000000e-01 : f32
    %98 = vector.broadcast %cst_50 : f32 to vector<16x64xf32>
    %99 = arith.mulf %98, %97 : vector<16x64xf32>
    %cst_51 = arith.constant 4.471500e-02 : f32
    %100 = vector.broadcast %cst_51 : f32 to vector<16x64xf32>
    %101 = arith.mulf %100, %97 : vector<16x64xf32>
    %102 = arith.mulf %101, %97 : vector<16x64xf32>
    %103 = arith.mulf %102, %97 : vector<16x64xf32>
    %104 = arith.addf %97, %103 : vector<16x64xf32>
    %cst_52 = arith.constant 0.797884583 : f32
    %105 = vector.broadcast %cst_52 : f32 to vector<16x64xf32>
    %106 = arith.mulf %105, %104 : vector<16x64xf32>
    %107 = math.tanh %106 : vector<16x64xf32>
    %cst_53 = arith.constant 1.000000e+00 : f32
    %108 = vector.broadcast %cst_53 : f32 to vector<16x64xf32>
    %109 = arith.addf %108, %107 : vector<16x64xf32>
    %110 = arith.mulf %99, %109 : vector<16x64xf32>
    %cst_54 = arith.constant dense<0.000000e+00> : vector<16x32xf32>
    %111 = tpu.matmul %110, %5, %cst_54 {dimension_numbers = #tpu.dot_dimension_numbers<[1], [0], [0], [1], [0, 0, 1, 1], [], []>} : vector<16x64xf32>, vector<64x32xf32>, vector<16x32xf32> -> vector<16x32xf32>
    %112 = arith.addf %111, %14 : vector<16x32xf32>
    %113 = arith.addf %112, %95 : vector<16x32xf32>
    %cst_55 = arith.constant dense<0.000000e+00> : vector<16xf32>
    %114 = vector.multi_reduction <add>, %113, %cst_55 [1] : vector<16x32xf32> to vector<16xf32>
    %115 = vector.shape_cast %114 : vector<16xf32> to vector<16x1xf32>
    %cst_56 = arith.constant 3.200000e+01 : f32
    %116 = vector.broadcast %cst_56 : f32 to vector<16x1xf32>
    %117 = arith.divf %115, %116 : vector<16x1xf32>
    %118 = vector.broadcast %117 : vector<16x1xf32> to vector<16x32xf32>
    %119 = arith.subf %113, %118 : vector<16x32xf32>
    %120 = arith.mulf %119, %119 : vector<16x32xf32>
    %cst_57 = arith.constant dense<0.000000e+00> : vector<16xf32>
    %121 = vector.multi_reduction <add>, %120, %cst_57 [1] : vector<16x32xf32> to vector<16xf32>
    %122 = vector.shape_cast %121 : vector<16xf32> to vector<16x1xf32>
    %cst_58 = arith.constant 3.200000e+01 : f32
    %123 = vector.broadcast %cst_58 : f32 to vector<16x1xf32>
    %124 = arith.divf %122, %123 : vector<16x1xf32>
    %cst_59 = arith.constant 9.99999996E-13 : f32
    %125 = vector.broadcast %cst_59 : f32 to vector<16x1xf32>
    %126 = arith.addf %124, %125 : vector<16x1xf32>
    %127 = math.rsqrt %126 : vector<16x1xf32>
    %128 = vector.broadcast %127 : vector<16x1xf32> to vector<16x32xf32>
    %129 = arith.mulf %119, %128 : vector<16x32xf32>
    %130 = arith.mulf %23, %129 : vector<16x32xf32>
    %131 = arith.addf %130, %26 : vector<16x32xf32>
    %c0_60 = arith.constant 0 : index
    %c0_61 = arith.constant 0 : index
    %c0_62 = arith.constant 0 : index
    %132 = vector.load %arg15[%c0_60, %c0_61, %c0_62] : memref<2x16x32xf32, #tpu.memory_space<vmem>>, vector<1x16x32xf32>
    %133 = vector.shape_cast %132 : vector<1x16x32xf32> to vector<16x32xf32>
    %134 = vector.shape_cast %131 : vector<16x32xf32> to vector<1x16x32xf32>
    tpu.vector_store %arg15[%c0_60, %c0_61, %c0_62], %134 {strides = array<i32>} : memref<2x16x32xf32, #tpu.memory_space<vmem>>, vector<1x16x32xf32>,
    %cst_63 = arith.constant dense<0.000000e+00> : vector<16x16xf32>
    %135 = tpu.matmul %131, %0, %cst_63 {dimension_numbers = #tpu.dot_dimension_numbers<[1], [0], [0], [1], [0, 0, 1, 1], [], []>} : vector<16x32xf32>, vector<32x16xf32>, vector<16x16xf32> -> vector<16x16xf32>
    %cst_64 = arith.constant dense<0.000000e+00> : vector<16x16xf32>
    %136 = tpu.matmul %131, %1, %cst_64 {dimension_numbers = #tpu.dot_dimension_numbers<[1], [0], [0], [1], [0, 0, 1, 1], [], []>} : vector<16x32xf32>, vector<32x16xf32>, vector<16x16xf32> -> vector<16x16xf32>
    %cst_65 = arith.constant dense<0.000000e+00> : vector<16x16xf32>
    %137 = tpu.matmul %131, %2, %cst_65 {dimension_numbers = #tpu.dot_dimension_numbers<[1], [0], [0], [1], [0, 0, 1, 1], [], []>} : vector<16x32xf32>, vector<32x16xf32>, vector<16x16xf32> -> vector<16x16xf32>
    %138 = vector.extract_strided_slice %135 {offsets = [0, 0], sizes = [16, 8], strides = [1, 1]} : vector<16x16xf32> to vector<16x8xf32>
    %139 = vector.extract_strided_slice %136 {offsets = [0, 0], sizes = [16, 8], strides = [1, 1]} : vector<16x16xf32> to vector<16x8xf32>
    %140 = vector.extract_strided_slice %137 {offsets = [0, 0], sizes = [16, 8], strides = [1, 1]} : vector<16x16xf32> to vector<16x8xf32>
    %141 = tpu.transpose %139, [1, 0] : vector<16x8xf32> -> vector<8x16xf32>
    %cst_66 = arith.constant dense<0.000000e+00> : vector<16x16xf32>
    %142 = tpu.matmul %138, %141, %cst_66 {dimension_numbers = #tpu.dot_dimension_numbers<[1], [0], [0], [1], [0, 0, 1, 1], [], []>} : vector<16x8xf32>, vector<8x16xf32>, vector<16x16xf32> -> vector<16x16xf32>
    %cst_67 = arith.constant 0.353553385 : f32
    %143 = vector.broadcast %cst_67 : f32 to vector<16x16xf32>
    %144 = arith.mulf %142, %143 : vector<16x16xf32>
    %145 = arith.addf %144, %31 : vector<16x16xf32>
    %cst_68 = arith.constant dense<0xFF800000> : vector<16xf32>
    %146 = vector.multi_reduction <maximumf>, %145, %cst_68 [1] : vector<16x16xf32> to vector<16xf32>
    %147 = vector.shape_cast %146 : vector<16xf32> to vector<16x1xf32>
    %148 = vector.broadcast %147 : vector<16x1xf32> to vector<16x16xf32>
    %149 = arith.subf %145, %148 : vector<16x16xf32>
    %150 = math.exp %149 : vector<16x16xf32>
    %cst_69 = arith.constant dense<0.000000e+00> : vector<16xf32>
    %151 = vector.multi_reduction <add>, %150, %cst_69 [1] : vector<16x16xf32> to vector<16xf32>
    %152 = vector.shape_cast %151 : vector<16xf32> to vector<16x1xf32>
    %153 = tpu.reciprocal %152 {approx = true} : vector<16x1xf32> -> vector<16x1xf32>
    %154 = vector.broadcast %153 : vector<16x1xf32> to vector<16x16xf32>
    %155 = arith.mulf %150, %154 : vector<16x16xf32>
    %cst_70 = arith.constant dense<0.000000e+00> : vector<16x8xf32>
    %156 = tpu.matmul %155, %140, %cst_70 {dimension_numbers = #tpu.dot_dimension_numbers<[1], [0], [0], [1], [0, 0, 1, 1], [], []>} : vector<16x16xf32>, vector<16x8xf32>, vector<16x8xf32> -> vector<16x8xf32>
    %157 = vector.extract_strided_slice %135 {offsets = [0, 8], sizes = [16, 8], strides = [1, 1]} : vector<16x16xf32> to vector<16x8xf32>
    %158 = vector.extract_strided_slice %136 {offsets = [0, 8], sizes = [16, 8], strides = [1, 1]} : vector<16x16xf32> to vector<16x8xf32>
    %159 = vector.extract_strided_slice %137 {offsets = [0, 8], sizes = [16, 8], strides = [1, 1]} : vector<16x16xf32> to vector<16x8xf32>
    %160 = tpu.transpose %158, [1, 0] : vector<16x8xf32> -> vector<8x16xf32>
    %cst_71 = arith.constant dense<0.000000e+00> : vector<16x16xf32>
    %161 = tpu.matmul %157, %160, %cst_71 {dimension_numbers = #tpu.dot_dimension_numbers<[1], [0], [0], [1], [0, 0, 1, 1], [], []>} : vector<16x8xf32>, vector<8x16xf32>, vector<16x16xf32> -> vector<16x16xf32>
    %cst_72 = arith.constant 0.353553385 : f32
    %162 = vector.broadcast %cst_72 : f32 to vector<16x16xf32>
    %163 = arith.mulf %161, %162 : vector<16x16xf32>
    %164 = arith.addf %163, %31 : vector<16x16xf32>
    %cst_73 = arith.constant dense<0xFF800000> : vector<16xf32>
    %165 = vector.multi_reduction <maximumf>, %164, %cst_73 [1] : vector<16x16xf32> to vector<16xf32>
    %166 = vector.shape_cast %165 : vector<16xf32> to vector<16x1xf32>
    %167 = vector.broadcast %166 : vector<16x1xf32> to vector<16x16xf32>
    %168 = arith.subf %164, %167 : vector<16x16xf32>
    %169 = math.exp %168 : vector<16x16xf32>
    %cst_74 = arith.constant dense<0.000000e+00> : vector<16xf32>
    %170 = vector.multi_reduction <add>, %169, %cst_74 [1] : vector<16x16xf32> to vector<16xf32>
    %171 = vector.shape_cast %170 : vector<16xf32> to vector<16x1xf32>
    %172 = tpu.reciprocal %171 {approx = true} : vector<16x1xf32> -> vector<16x1xf32>
    %173 = vector.broadcast %172 : vector<16x1xf32> to vector<16x16xf32>
    %174 = arith.mulf %169, %173 : vector<16x16xf32>
    %cst_75 = arith.constant dense<0.000000e+00> : vector<16x8xf32>
    %175 = tpu.matmul %174, %159, %cst_75 {dimension_numbers = #tpu.dot_dimension_numbers<[1], [0], [0], [1], [0, 0, 1, 1], [], []>} : vector<16x16xf32>, vector<16x8xf32>, vector<16x8xf32> -> vector<16x8xf32>
    %176 = tpu.concatenate %156, %175, %156, %175 in 1 : vector<16x8xf32>, vector<16x8xf32>, vector<16x8xf32>, vector<16x8xf32> -> vector<16x32xf32>
    %cst_76 = arith.constant dense<0.000000e+00> : vector<16x32xf32>
    %177 = tpu.matmul %131, %3, %cst_76 {dimension_numbers = #tpu.dot_dimension_numbers<[1], [0], [0], [1], [0, 0, 1, 1], [], []>} : vector<16x32xf32>, vector<32x32xf32>, vector<16x32xf32> -> vector<16x32xf32>
    %178 = arith.addf %177, %8 : vector<16x32xf32>
    %179 = arith.addf %178, %176 : vector<16x32xf32>
    %cst_77 = arith.constant dense<0.000000e+00> : vector<16xf32>
    %180 = vector.multi_reduction <add>, %179, %cst_77 [1] : vector<16x32xf32> to vector<16xf32>
    %181 = vector.shape_cast %180 : vector<16xf32> to vector<16x1xf32>
    %cst_78 = arith.constant 3.200000e+01 : f32
    %182 = vector.broadcast %cst_78 : f32 to vector<16x1xf32>
    %183 = arith.divf %181, %182 : vector<16x1xf32>
    %184 = vector.broadcast %183 : vector<16x1xf32> to vector<16x32xf32>
    %185 = arith.subf %179, %184 : vector<16x32xf32>
    %186 = arith.mulf %185, %185 : vector<16x32xf32>
    %cst_79 = arith.constant dense<0.000000e+00> : vector<16xf32>
    %187 = vector.multi_reduction <add>, %186, %cst_79 [1] : vector<16x32xf32> to vector<16xf32>
    %188 = vector.shape_cast %187 : vector<16xf32> to vector<16x1xf32>
    %cst_80 = arith.constant 3.200000e+01 : f32
    %189 = vector.broadcast %cst_80 : f32 to vector<16x1xf32>
    %190 = arith.divf %188, %189 : vector<16x1xf32>
    %cst_81 = arith.constant 9.99999996E-13 : f32
    %191 = vector.broadcast %cst_81 : f32 to vector<16x1xf32>
    %192 = arith.addf %190, %191 : vector<16x1xf32>
    %193 = math.rsqrt %192 : vector<16x1xf32>
    %194 = vector.broadcast %193 : vector<16x1xf32> to vector<16x32xf32>
    %195 = arith.mulf %185, %194 : vector<16x32xf32>
    %196 = arith.mulf %17, %195 : vector<16x32xf32>
    %197 = arith.addf %196, %20 : vector<16x32xf32>
    %cst_82 = arith.constant dense<0.000000e+00> : vector<16x64xf32>
    %198 = tpu.matmul %197, %4, %cst_82 {dimension_numbers = #tpu.dot_dimension_numbers<[1], [0], [0], [1], [0, 0, 1, 1], [], []>} : vector<16x32xf32>, vector<32x64xf32>, vector<16x64xf32> -> vector<16x64xf32>
    %199 = arith.addf %198, %11 : vector<16x64xf32>
    %cst_83 = arith.constant 5.000000e-01 : f32
    %200 = vector.broadcast %cst_83 : f32 to vector<16x64xf32>
    %201 = arith.mulf %200, %199 : vector<16x64xf32>
    %cst_84 = arith.constant 4.471500e-02 : f32
    %202 = vector.broadcast %cst_84 : f32 to vector<16x64xf32>
    %203 = arith.mulf %202, %199 : vector<16x64xf32>
    %204 = arith.mulf %203, %199 : vector<16x64xf32>
    %205 = arith.mulf %204, %199 : vector<16x64xf32>
    %206 = arith.addf %199, %205 : vector<16x64xf32>
    %cst_85 = arith.constant 0.797884583 : f32
    %207 = vector.broadcast %cst_85 : f32 to vector<16x64xf32>
    %208 = arith.mulf %207, %206 : vector<16x64xf32>
    %209 = math.tanh %208 : vector<16x64xf32>
    %cst_86 = arith.constant 1.000000e+00 : f32
    %210 = vector.broadcast %cst_86 : f32 to vector<16x64xf32>
    %211 = arith.addf %210, %209 : vector<16x64xf32>
    %212 = arith.mulf %201, %211 : vector<16x64xf32>
    %cst_87 = arith.constant dense<0.000000e+00> : vector<16x32xf32>
    %213 = tpu.matmul %212, %5, %cst_87 {dimension_numbers = #tpu.dot_dimension_numbers<[1], [0], [0], [1], [0, 0, 1, 1], [], []>} : vector<16x64xf32>, vector<64x32xf32>, vector<16x32xf32> -> vector<16x32xf32>
    %214 = arith.addf %213, %14 : vector<16x32xf32>
    %215 = arith.addf %214, %197 : vector<16x32xf32>
    %cst_88 = arith.constant dense<0.000000e+00> : vector<16xf32>
    %216 = vector.multi_reduction <add>, %215, %cst_88 [1] : vector<16x32xf32> to vector<16xf32>
    %217 = vector.shape_cast %216 : vector<16xf32> to vector<16x1xf32>
    %cst_89 = arith.constant 3.200000e+01 : f32
    %218 = vector.broadcast %cst_89 : f32 to vector<16x1xf32>
    %219 = arith.divf %217, %218 : vector<16x1xf32>
    %220 = vector.broadcast %219 : vector<16x1xf32> to vector<16x32xf32>
    %221 = arith.subf %215, %220 : vector<16x32xf32>
    %222 = arith.mulf %221, %221 : vector<16x32xf32>
    %cst_90 = arith.constant dense<0.000000e+00> : vector<16xf32>
    %223 = vector.multi_reduction <add>, %222, %cst_90 [1] : vector<16x32xf32> to vector<16xf32>
    %224 = vector.shape_cast %223 : vector<16xf32> to vector<16x1xf32>
    %cst_91 = arith.constant 3.200000e+01 : f32
    %225 = vector.broadcast %cst_91 : f32 to vector<16x1xf32>
    %226 = arith.divf %224, %225 : vector<16x1xf32>
    %cst_92 = arith.constant 9.99999996E-13 : f32
    %227 = vector.broadcast %cst_92 : f32 to vector<16x1xf32>
    %228 = arith.addf %226, %227 : vector<16x1xf32>
    %229 = math.rsqrt %228 : vector<16x1xf32>
    %230 = vector.broadcast %229 : vector<16x1xf32> to vector<16x32xf32>
    %231 = arith.mulf %221, %230 : vector<16x32xf32>
    %232 = arith.mulf %23, %231 : vector<16x32xf32>
    %233 = arith.addf %232, %26 : vector<16x32xf32>
    %c1 = arith.constant 1 : index
    %c0_93 = arith.constant 0 : index
    %c0_94 = arith.constant 0 : index
    %234 = vector.load %arg15[%c1, %c0_93, %c0_94] : memref<2x16x32xf32, #tpu.memory_space<vmem>>, vector<1x16x32xf32>
    %235 = vector.shape_cast %234 : vector<1x16x32xf32> to vector<16x32xf32>
    %236 = vector.shape_cast %233 : vector<16x32xf32> to vector<1x16x32xf32>
    tpu.vector_store %arg15[%c1, %c0_93, %c0_94], %236 {strides = array<i32>} : memref<2x16x32xf32, #tpu.memory_space<vmem>>, vector<1x16x32xf32>,
    return
  }
}

</mosaic_0001>

<llo_original>
// kernel: tpu_custom_call.1
$region0: #{tpu_custom_call.1}
  #allocation0 [shape = 'u32[]', space=smem, size = 0x4, offset = 0x4, fixed_abs, tag = 'smem constant byte address 0x4 - core index']
  #allocation1 [shape = 'u32[144,128]{1,0:T(1,128)}', space=vmem, size = 0x12000, scoped, tag = 'internal scratch']
  %s0 = inlined_call_operand.vmem [shape: f32[16,32], index: 0, kind: input, shape index: {}]
  %s1 = inlined_call_operand.vmem [shape: f32[16,16], index: 1, kind: input, shape index: {}]
  %s2 = inlined_call_operand.vmem [shape: f32[32,16], index: 2, kind: input, shape index: {}]
  %s3 = inlined_call_operand.vmem [shape: f32[32,16], index: 3, kind: input, shape index: {}]
  %s4 = inlined_call_operand.vmem [shape: f32[32,16], index: 4, kind: input, shape index: {}]
  %s5 = inlined_call_operand.vmem [shape: f32[32,32], index: 5, kind: input, shape index: {}]
  %s6 = inlined_call_operand.vmem [shape: f32[1,32], index: 6, kind: input, shape index: {}]
  %s7 = inlined_call_operand.vmem [shape: f32[1,32], index: 7, kind: input, shape index: {}]
  %s8 = inlined_call_operand.vmem [shape: f32[1,32], index: 8, kind: input, shape index: {}]
  %s9 = inlined_call_operand.vmem [shape: f32[32,64], index: 9, kind: input, shape index: {}]
  %s10 = inlined_call_operand.vmem [shape: f32[1,64], index: 10, kind: input, shape index: {}]
  %s11 = inlined_call_operand.vmem [shape: f32[64,32], index: 11, kind: input, shape index: {}]
  %s12 = inlined_call_operand.vmem [shape: f32[1,32], index: 12, kind: input, shape index: {}]
  %s13 = inlined_call_operand.vmem [shape: f32[1,32], index: 13, kind: input, shape index: {}]
  %s14 = inlined_call_operand.vmem [shape: f32[1,32], index: 14, kind: input, shape index: {}]
  %s15 = inlined_call_operand.hbm [shape: f32[2,16,32], index: 15, kind: output, shape index: {}]
  %s16 = sld [smem:[#allocation0]]
  $region70: #{tpu_custom_call.1} parent=0
    _
  %s18 = ssub.s32 1, %s16
  %s19 = scalar_select 0, %s18, %s16
  $region1: #{tpu_custom_call.1} parent=0
    #allocation2 [shape = 'u8[16384]{0}', space=vmem, size = 0x4000, scoped, tag = 'output window, operand 0, single buffered']
    #allocation3 [shape = 's32[1]{0}', space=sflag, size = 0x4, scoped, tag = 'scoped memory for tpu_custom_call.1']
    %20 = vsyncpa [#allocation3], 0
    // Predicated region
    $region2: #{tpu_custom_call.1} parent=1 // pred_check
      _
    $region3: #{tpu_custom_call.1} parent=1 // pred_check_branch
      %22 = sbr.rel (0) target = $region5
    $region4: #{tpu_custom_call.1} parent=1 // pred_region
      _
    $region5: #{tpu_custom_call.1} parent=1 // pred_fallthru
      _
    // Predicated region
    $region6: #{tpu_custom_call.1} parent=1 // pred_check
      _
    $region7: #{tpu_custom_call.1} parent=1 // pred_check_branch
      %24 = sbr.rel (0) target = $region9
    $region8: #{tpu_custom_call.1} parent=1 // pred_region
      _
    $region9: #{tpu_custom_call.1} parent=1 // pred_fallthru
      _
    // Predicated region
    $region10: #{tpu_custom_call.1} parent=1 // pred_check
      _
    $region11: #{tpu_custom_call.1} parent=1 // pred_check_branch
      %26 = sbr.rel (0) target = $region13
    $region12: #{tpu_custom_call.1} parent=1 // pred_region
      _
    $region13: #{tpu_custom_call.1} parent=1 // pred_fallthru
      _
    // Predicated region
    $region14: #{tpu_custom_call.1} parent=1 // pred_check
      _
    $region15: #{tpu_custom_call.1} parent=1 // pred_check_branch
      %28 = sbr.rel (0) target = $region17
    $region16: #{tpu_custom_call.1} parent=1 // pred_region
      _
    $region17: #{tpu_custom_call.1} parent=1 // pred_fallthru
      _
    // Predicated region
    $region18: #{tpu_custom_call.1} parent=1 // pred_check
      _
    $region19: #{tpu_custom_call.1} parent=1 // pred_check_branch
      %30 = sbr.rel (0) target = $region21
    $region20: #{tpu_custom_call.1} parent=1 // pred_region
      _
    $region21: #{tpu_custom_call.1} parent=1 // pred_fallthru
      _
    // Predicated region
    $region22: #{tpu_custom_call.1} parent=1 // pred_check
      _
    $region23: #{tpu_custom_call.1} parent=1 // pred_check_branch
      %32 = sbr.rel (0) target = $region25
    $region24: #{tpu_custom_call.1} parent=1 // pred_region
      _
    $region25: #{tpu_custom_call.1} parent=1 // pred_fallthru
      _
    // Predicated region
    $region26: #{tpu_custom_call.1} parent=1 // pred_check
      _
    $region27: #{tpu_custom_call.1} parent=1 // pred_check_branch
      %34 = sbr.rel (0) target = $region29
    $region28: #{tpu_custom_call.1} parent=1 // pred_region
      _
    $region29: #{tpu_custom_call.1} parent=1 // pred_fallthru
      _
    // Predicated region
    $region30: #{tpu_custom_call.1} parent=1 // pred_check
      _
    $region31: #{tpu_custom_call.1} parent=1 // pred_check_branch
      %36 = sbr.rel (0) target = $region33
    $region32: #{tpu_custom_call.1} parent=1 // pred_region
      _
    $region33: #{tpu_custom_call.1} parent=1 // pred_fallthru
      _
    // Predicated region
    $region34: #{tpu_custom_call.1} parent=1 // pred_check
      _
    $region35: #{tpu_custom_call.1} parent=1 // pred_check_branch
      %38 = sbr.rel (0) target = $region37
    $region36: #{tpu_custom_call.1} parent=1 // pred_region
      _
    $region37: #{tpu_custom_call.1} parent=1 // pred_fallthru
      _
    // Predicated region
    $region38: #{tpu_custom_call.1} parent=1 // pred_check
      _
    $region39: #{tpu_custom_call.1} parent=1 // pred_check_branch
      %40 = sbr.rel (0) target = $region41
    $region40: #{tpu_custom_call.1} parent=1 // pred_region
      _
    $region41: #{tpu_custom_call.1} parent=1 // pred_fallthru
      _
    // Predicated region
    $region42: #{tpu_custom_call.1} parent=1 // pred_check
      _
    $region43: #{tpu_custom_call.1} parent=1 // pred_check_branch
      %42 = sbr.rel (0) target = $region45
    $region44: #{tpu_custom_call.1} parent=1 // pred_region
      _
    $region45: #{tpu_custom_call.1} parent=1 // pred_fallthru
      _
    // Predicated region
    $region46: #{tpu_custom_call.1} parent=1 // pred_check
      _
    $region47: #{tpu_custom_call.1} parent=1 // pred_check_branch
      %44 = sbr.rel (0) target = $region49
    $region48: #{tpu_custom_call.1} parent=1 // pred_region
      _
    $region49: #{tpu_custom_call.1} parent=1 // pred_fallthru
      _
    // Predicated region
    $region50: #{tpu_custom_call.1} parent=1 // pred_check
      _
    $region51: #{tpu_custom_call.1} parent=1 // pred_check_branch
      %46 = sbr.rel (0) target = $region53
    $region52: #{tpu_custom_call.1} parent=1 // pred_region
      _
    $region53: #{tpu_custom_call.1} parent=1 // pred_fallthru
      _
    // Predicated region
    $region54: #{tpu_custom_call.1} parent=1 // pred_check
      _
    $region55: #{tpu_custom_call.1} parent=1 // pred_check_branch
      %48 = sbr.rel (0) target = $region57
    $region56: #{tpu_custom_call.1} parent=1 // pred_region
      _
    $region57: #{tpu_custom_call.1} parent=1 // pred_fallthru
      _
    // Predicated region
    $region58: #{tpu_custom_call.1} parent=1 // pred_check
      _
    $region59: #{tpu_custom_call.1} parent=1 // pred_check_branch
      %50 = sbr.rel (0) target = $region61
    $region60: #{tpu_custom_call.1} parent=1 // pred_region
      _
    $region61: #{tpu_custom_call.1} parent=1 // pred_fallthru
      _
    %v51 = vld [vmem:[%s2] sm:$0xff]
    %v52 = vld [vmem:[%s2 + $0x8] sm:$0xff]
    %v53 = vld [vmem:[%s2 + $0x10] sm:$0xff]
    %v54 = vld [vmem:[%s2 + $0x18] sm:$0xff]
    %v55 = vld [vmem:[%s3] sm:$0xff]
    %v56 = vld [vmem:[%s3 + $0x8] sm:$0xff]
    %v57 = vld [vmem:[%s3 + $0x10] sm:$0xff]
    %v58 = vld [vmem:[%s3 + $0x18] sm:$0xff]
    %v59 = vld [vmem:[%s4] sm:$0xff]
    %v60 = vld [vmem:[%s4 + $0x8] sm:$0xff]
    %v61 = vld [vmem:[%s4 + $0x10] sm:$0xff]
    %v62 = vld [vmem:[%s4 + $0x18] sm:$0xff]
    %v63 = vld [vmem:[%s5] sm:$0xff]
    %v64 = vld [vmem:[%s5 + $0x8] sm:$0xff]
    %v65 = vld [vmem:[%s5 + $0x10] sm:$0xff]
    %v66 = vld [vmem:[%s5 + $0x18] sm:$0xff]
    %v67 = vld [vmem:[%s9] sm:$0xff]
    %v68 = vld [vmem:[%s9 + $0x8] sm:$0xff]
    %v69 = vld [vmem:[%s9 + $0x10] sm:$0xff]
    %v70 = vld [vmem:[%s9 + $0x18] sm:$0xff]
    %v71 = vld [vmem:[%s11] sm:$0xff]
    %v72 = vld [vmem:[%s11 + $0x8] sm:$0xff]
    %v73 = vld [vmem:[%s11 + $0x10] sm:$0xff]
    %v74 = vld [vmem:[%s11 + $0x18] sm:$0xff]
    %v75 = vld [vmem:[%s11 + $0x20] sm:$0xff]
    %v76 = vld [vmem:[%s11 + $0x28] sm:$0xff]
    %v77 = vld [vmem:[%s11 + $0x30] sm:$0xff]
    %v78 = vld [vmem:[%s11 + $0x38] sm:$0xff]
    %v79 = vld [vmem:[%s6] sm:$0x1]
    %v81 = vlaneseq
    %v82 = vshrl.u32 %v81, 7
    %v83 = vsub.s32 0, %v82
    %v84 = vrot.slane %v79, %v83
    %v86 = vld [vmem:[%s10] sm:$0x1]
    %v88 = vlaneseq
    %v89 = vshrl.u32 %v88, 7
    %v90 = vsub.s32 0, %v89
    %v91 = vrot.slane %v86, %v90
    %v93 = vld [vmem:[%s12] sm:$0x1]
    %v95 = vlaneseq
    %v96 = vshrl.u32 %v95, 7
    %v97 = vsub.s32 0, %v96
    %v98 = vrot.slane %v93, %v97
    %v100 = vld [vmem:[%s7] sm:$0x1]
    %v102 = vlaneseq
    %v103 = vshrl.u32 %v102, 7
    %v104 = vsub.s32 0, %v103
    %v105 = vrot.slane %v100, %v104
    %v107 = vld [vmem:[%s8] sm:$0x1]
    %v109 = vlaneseq
    %v110 = vshrl.u32 %v109, 7
    %v111 = vsub.s32 0, %v110
    %v112 = vrot.slane %v107, %v111
    %v114 = vld [vmem:[%s13] sm:$0x1]
    %v116 = vlaneseq
    %v117 = vshrl.u32 %v116, 7
    %v118 = vsub.s32 0, %v117
    %v119 = vrot.slane %v114, %v118
    %v121 = vld [vmem:[%s14] sm:$0x1]
    %v123 = vlaneseq
    %v124 = vshrl.u32 %v123, 7
    %v125 = vsub.s32 0, %v124
    %v126 = vrot.slane %v121, %v125
    %v128 = vld [vmem:[%s1] sm:$0xff]
    %v129 = vld [vmem:[%s1 + $0x8] sm:$0xff]
    %v130 = vsub.f32 1.0, %v128
    %v131 = vsub.f32 1.0, %v129
    %v132 = vmul.f32 %v130, -1e+09
    %v133 = vmul.f32 %v131, -1e+09
    %v134 = vld [vmem:[%s0] sm:$0xff]
    %v135 = vld [vmem:[%s0 + $0x8] sm:$0xff]
    %vm136 = vcmask 261120
    %v138 = vsel %vm136, %v134, 0
    %v141 = vsel %vm136, %v135, 0
    %143 = vmatprep.subr.mxu0 0.0
    %144 = vmatpush1.msra.mxu0 0.0
    %145 = vmatprep.subr.mxu0 0.0
    %146 = vmatpush1.msra.mxu0 0.0
    %147 = vmatprep.subr.mxu0 0.0
    %148 = vmatpush1.msra.mxu0 0.0
    %149 = vmatprep.subr.mxu0 0.0
    %150 = vmatpush1.msra.mxu0 0.0
    %151 = vmatprep.subr.mxu0 0.0
    %152 = vmatpush1.msra.mxu0 0.0
    %153 = vmatprep.subr.mxu0 0.0
    %154 = vmatpush1.msra.mxu0 0.0
    %155 = vmatprep.subr.mxu0 0.0
    %156 = vmatpush1.msra.mxu0 0.0
    %157 = vmatprep.subr.mxu0 0.0
    %158 = vmatpush1.msra.mxu0 0.0
    %159 = vmatprep.subr.mxu0 0.0
    %160 = vmatpush1.msra.mxu0 0.0
    %161 = vmatprep.subr.mxu0 0.0
    %162 = vmatpush1.msra.mxu0 0.0
    %163 = vmatprep.subr.mxu0 0.0
    %164 = vmatpush1.msra.mxu0 0.0
    %165 = vmatprep.subr.mxu0 0.0
    %166 = vmatpush1.msra.mxu0 0.0
    %167 = vmatprep.subr.mxu0 0.0
    %168 = vmatpush1.msra.mxu0 %v54
    %169 = vmatprep.subr.mxu0 0.0
    %170 = vmatpush1.msra.mxu0 %v53
    %171 = vmatprep.subr.mxu0 0.0
    %172 = vmatpush1.msra.mxu0 %v52
    %173 = vmatprep.subr.mxu0 0.0
    %174 = vmatpush1.msra.mxu0 %v51
    %175 = vmatprep.subr.mxu0 0.0
    %176 = vmatpush2.msra.mxu0 0.0
    %177 = vmatprep.subr.mxu0 0.0
    %178 = vmatpush2.msra.mxu0 0.0
    %179 = vmatprep.subr.mxu0 0.0
    %180 = vmatpush2.msra.mxu0 0.0
    %181 = vmatprep.subr.mxu0 0.0
    %182 = vmatpush2.msra.mxu0 0.0
    %183 = vmatprep.subr.mxu0 0.0
    %184 = vmatpush2.msra.mxu0 0.0
    %185 = vmatprep.subr.mxu0 0.0
    %186 = vmatpush2.msra.mxu0 0.0
    %187 = vmatprep.subr.mxu0 0.0
    %188 = vmatpush2.msra.mxu0 0.0
    %189 = vmatprep.subr.mxu0 0.0
    %190 = vmatpush2.msra.mxu0 0.0
    %191 = vmatprep.subr.mxu0 0.0
    %192 = vmatpush2.msra.mxu0 0.0
    %193 = vmatprep.subr.mxu0 0.0
    %194 = vmatpush2.msra.mxu0 0.0
    %195 = vmatprep.subr.mxu0 0.0
    %196 = vmatpush2.msra.mxu0 0.0
    %197 = vmatprep.subr.mxu0 0.0
    %198 = vmatpush2.msra.mxu0 0.0
    %199 = vmatprep.subr.mxu0 0.0
    %200 = vmatpush2.msra.mxu0 0.0
    %201 = vmatprep.subr.mxu0 0.0
    %202 = vmatpush2.msra.mxu0 0.0
    %203 = vmatprep.subr.mxu0 0.0
    %204 = vmatpush2.msra.mxu0 0.0
    %205 = vmatprep.subr.mxu0 0.0
    %206 = vmatpush2.msra.mxu0 0.0
    %207 = vmatprep.mubr.f32.mxu0 0.0
    %208 = vmatmul.mubr.f32.gmra.mxu0 %v138
    %v209 = vpop.f32.mrf.mxu0
    %v210 = vadd.f32 0.0, %v209
    %v211 = vpop.f32.mrf.mxu0
    %212 = vmatprep.mubr.f32.mxu0 0.0
    %213 = vmatmul.mubr.f32.gmra.mxu0 %v141
    %v214 = vpop.f32.mrf.mxu0
    %v215 = vadd.f32 0.0, %v214
    %v216 = vpop.f32.mrf.mxu0
    %217 = vdwg.mxu0
    %218 = vmatprep.subr.mxu0 0.0
    %219 = vmatpush1.msra.mxu0 0.0
    %220 = vmatprep.subr.mxu0 0.0
    %221 = vmatpush1.msra.mxu0 0.0
    %222 = vmatprep.subr.mxu0 0.0
    %223 = vmatpush1.msra.mxu0 0.0
    %224 = vmatprep.subr.mxu0 0.0
    %225 = vmatpush1.msra.mxu0 0.0
    %226 = vmatprep.subr.mxu0 0.0
    %227 = vmatpush1.msra.mxu0 0.0
    %228 = vmatprep.subr.mxu0 0.0
    %229 = vmatpush1.msra.mxu0 0.0
    %230 = vmatprep.subr.mxu0 0.0
    %231 = vmatpush1.msra.mxu0 0.0
    %232 = vmatprep.subr.mxu0 0.0
    %233 = vmatpush1.msra.mxu0 0.0
    %234 = vmatprep.subr.mxu0 0.0
    %235 = vmatpush1.msra.mxu0 0.0
    %236 = vmatprep.subr.mxu0 0.0
    %237 = vmatpush1.msra.mxu0 0.0
    %238 = vmatprep.subr.mxu0 0.0
    %239 = vmatpush1.msra.mxu0 0.0
    %240 = vmatprep.subr.mxu0 0.0
    %241 = vmatpush1.msra.mxu0 0.0
    %242 = vmatprep.subr.mxu0 0.0
    %243 = vmatpush1.msra.mxu0 %v58
    %244 = vmatprep.subr.mxu0 0.0
    %245 = vmatpush1.msra.mxu0 %v57
    %246 = vmatprep.subr.mxu0 0.0
    %247 = vmatpush1.msra.mxu0 %v56
    %248 = vmatprep.subr.mxu0 0.0
    %249 = vmatpush1.msra.mxu0 %v55
    %250 = vmatprep.subr.mxu0 0.0
    %251 = vmatpush2.msra.mxu0 0.0
    %252 = vmatprep.subr.mxu0 0.0
    %253 = vmatpush2.msra.mxu0 0.0
    %254 = vmatprep.subr.mxu0 0.0
    %255 = vmatpush2.msra.mxu0 0.0
    %256 = vmatprep.subr.mxu0 0.0
    %257 = vmatpush2.msra.mxu0 0.0
    %258 = vmatprep.subr.mxu0 0.0
    %259 = vmatpush2.msra.mxu0 0.0
    %260 = vmatprep.subr.mxu0 0.0
    %261 = vmatpush2.msra.mxu0 0.0
    %262 = vmatprep.subr.mxu0 0.0
    %263 = vmatpush2.msra.mxu0 0.0
    %264 = vmatprep.subr.mxu0 0.0
    %265 = vmatpush2.msra.mxu0 0.0
    %266 = vmatprep.subr.mxu0 0.0
    %267 = vmatpush2.msra.mxu0 0.0
    %268 = vmatprep.subr.mxu0 0.0
    %269 = vmatpush2.msra.mxu0 0.0
    %270 = vmatprep.subr.mxu0 0.0
    %271 = vmatpush2.msra.mxu0 0.0
    %272 = vmatprep.subr.mxu0 0.0
    %273 = vmatpush2.msra.mxu0 0.0
    %274 = vmatprep.subr.mxu0 0.0
    %275 = vmatpush2.msra.mxu0 0.0
    %276 = vmatprep.subr.mxu0 0.0
    %277 = vmatpush2.msra.mxu0 0.0
    %278 = vmatprep.subr.mxu0 0.0
    %279 = vmatpush2.msra.mxu0 0.0
    %280 = vmatprep.subr.mxu0 0.0
    %281 = vmatpush2.msra.mxu0 0.0
    %282 = vmatprep.mubr.f32.mxu0 0.0
    %283 = vmatmul.mubr.f32.gmra.mxu0 %v138
    %v284 = vpop.f32.mrf.mxu0
    %v285 = vadd.f32 0.0, %v284
    %v286 = vpop.f32.mrf.mxu0
    %287 = vmatprep.mubr.f32.mxu0 0.0
    %288 = vmatmul.mubr.f32.gmra.mxu0 %v141
    %v289 = vpop.f32.mrf.mxu0
    %v290 = vadd.f32 0.0, %v289
    %v291 = vpop.f32.mrf.mxu0
    %292 = vdwg.mxu0
    %293 = vmatprep.subr.mxu0 0.0
    %294 = vmatpush1.msra.mxu0 0.0
    %295 = vmatprep.subr.mxu0 0.0
    %296 = vmatpush1.msra.mxu0 0.0
    %297 = vmatprep.subr.mxu0 0.0
    %298 = vmatpush1.msra.mxu0 0.0
    %299 = vmatprep.subr.mxu0 0.0
    %300 = vmatpush1.msra.mxu0 0.0
    %301 = vmatprep.subr.mxu0 0.0
    %302 = vmatpush1.msra.mxu0 0.0
    %303 = vmatprep.subr.mxu0 0.0
    %304 = vmatpush1.msra.mxu0 0.0
    %305 = vmatprep.subr.mxu0 0.0
    %306 = vmatpush1.msra.mxu0 0.0
    %307 = vmatprep.subr.mxu0 0.0
    %308 = vmatpush1.msra.mxu0 0.0
    %309 = vmatprep.subr.mxu0 0.0
    %310 = vmatpush1.msra.mxu0 0.0
    %311 = vmatprep.subr.mxu0 0.0
    %312 = vmatpush1.msra.mxu0 0.0
    %313 = vmatprep.subr.mxu0 0.0
    %314 = vmatpush1.msra.mxu0 0.0
    %315 = vmatprep.subr.mxu0 0.0
    %316 = vmatpush1.msra.mxu0 0.0
    %317 = vmatprep.subr.mxu0 0.0
    %318 = vmatpush1.msra.mxu0 %v62
    %319 = vmatprep.subr.mxu0 0.0
    %320 = vmatpush1.msra.mxu0 %v61
    %321 = vmatprep.subr.mxu0 0.0
    %322 = vmatpush1.msra.mxu0 %v60
    %323 = vmatprep.subr.mxu0 0.0
    %324 = vmatpush1.msra.mxu0 %v59
    %325 = vmatprep.subr.mxu0 0.0
    %326 = vmatpush2.msra.mxu0 0.0
    %327 = vmatprep.subr.mxu0 0.0
    %328 = vmatpush2.msra.mxu0 0.0
    %329 = vmatprep.subr.mxu0 0.0
    %330 = vmatpush2.msra.mxu0 0.0
    %331 = vmatprep.subr.mxu0 0.0
    %332 = vmatpush2.msra.mxu0 0.0
    %333 = vmatprep.subr.mxu0 0.0
    %334 = vmatpush2.msra.mxu0 0.0
    %335 = vmatprep.subr.mxu0 0.0
    %336 = vmatpush2.msra.mxu0 0.0
    %337 = vmatprep.subr.mxu0 0.0
    %338 = vmatpush2.msra.mxu0 0.0
    %339 = vmatprep.subr.mxu0 0.0
    %340 = vmatpush2.msra.mxu0 0.0
    %341 = vmatprep.subr.mxu0 0.0
    %342 = vmatpush2.msra.mxu0 0.0
    %343 = vmatprep.subr.mxu0 0.0
    %344 = vmatpush2.msra.mxu0 0.0
    %345 = vmatprep.subr.mxu0 0.0
    %346 = vmatpush2.msra.mxu0 0.0
    %347 = vmatprep.subr.mxu0 0.0
    %348 = vmatpush2.msra.mxu0 0.0
    %349 = vmatprep.subr.mxu0 0.0
    %350 = vmatpush2.msra.mxu0 0.0
    %351 = vmatprep.subr.mxu0 0.0
    %352 = vmatpush2.msra.mxu0 0.0
    %353 = vmatprep.subr.mxu0 0.0
    %354 = vmatpush2.msra.mxu0 0.0
    %355 = vmatprep.subr.mxu0 0.0
    %356 = vmatpush2.msra.mxu0 0.0
    %357 = vmatprep.mubr.f32.mxu0 0.0
    %358 = vmatmul.mubr.f32.gmra.mxu0 %v138
    %v359 = vpop.f32.mrf.mxu0
    %v360 = vadd.f32 0.0, %v359
    %v361 = vpop.f32.mrf.mxu0
    %362 = vmatprep.mubr.f32.mxu0 0.0
    %363 = vmatmul.mubr.f32.gmra.mxu0 %v141
    %v364 = vpop.f32.mrf.mxu0
    %v365 = vadd.f32 0.0, %v364
    %v366 = vpop.f32.mrf.mxu0
    %367 = vdwg.mxu0
    %vm368 = vcmask 64512
    %v370 = vsel %vm368, %v210, 0
    %v373 = vsel %vm368, %v215, 0
    %v376 = vsel %vm368, %v285, 0
    %v379 = vsel %vm368, %v290, 0
    %381 = vmatprep.subr.mxu0 0.0
    %382 = vmatpush1.xpose.msra.mxu0 0.0
    %383 = vmatprep.subr.mxu0 0.0
    %384 = vmatpush1.xpose.msra.mxu0 0.0
    %385 = vmatprep.subr.mxu0 0.0
    %386 = vmatpush1.xpose.msra.mxu0 0.0
    %387 = vmatprep.subr.mxu0 0.0
    %388 = vmatpush1.xpose.msra.mxu0 0.0
    %389 = vmatprep.subr.mxu0 0.0
    %390 = vmatpush1.xpose.msra.mxu0 0.0
    %391 = vmatprep.subr.mxu0 0.0
    %392 = vmatpush1.xpose.msra.mxu0 0.0
    %393 = vmatprep.subr.mxu0 0.0
    %394 = vmatpush1.xpose.msra.mxu0 0.0
    %395 = vmatprep.subr.mxu0 0.0
    %396 = vmatpush1.xpose.msra.mxu0 0.0
    %397 = vmatprep.subr.mxu0 0.0
    %398 = vmatpush1.xpose.msra.mxu0 0.0
    %399 = vmatprep.subr.mxu0 0.0
    %400 = vmatpush1.xpose.msra.mxu0 0.0
    %401 = vmatprep.subr.mxu0 0.0
    %402 = vmatpush1.xpose.msra.mxu0 0.0
    %403 = vmatprep.subr.mxu0 0.0
    %404 = vmatpush1.xpose.msra.mxu0 0.0
    %405 = vmatprep.subr.mxu0 0.0
    %406 = vmatpush1.xpose.msra.mxu0 0.0
    %407 = vmatprep.subr.mxu0 0.0
    %408 = vmatpush1.xpose.msra.mxu0 0.0
    %409 = vmatprep.subr.mxu0 0.0
    %410 = vmatpush1.xpose.msra.mxu0 %v379
    %411 = vmatprep.subr.mxu0 0.0
    %412 = vmatpush1.xpose.msra.mxu0 %v376
    %413 = vmatprep.subr.mxu0 0.0
    %414 = vmatpush2.xpose.msra.mxu0 0.0
    %415 = vmatprep.subr.mxu0 0.0
    %416 = vmatpush2.xpose.msra.mxu0 0.0
    %417 = vmatprep.subr.mxu0 0.0
    %418 = vmatpush2.xpose.msra.mxu0 0.0
    %419 = vmatprep.subr.mxu0 0.0
    %420 = vmatpush2.xpose.msra.mxu0 0.0
    %421 = vmatprep.subr.mxu0 0.0
    %422 = vmatpush2.xpose.msra.mxu0 0.0
    %423 = vmatprep.subr.mxu0 0.0
    %424 = vmatpush2.xpose.msra.mxu0 0.0
    %425 = vmatprep.subr.mxu0 0.0
    %426 = vmatpush2.xpose.msra.mxu0 0.0
    %427 = vmatprep.subr.mxu0 0.0
    %428 = vmatpush2.xpose.msra.mxu0 0.0
    %429 = vmatprep.subr.mxu0 0.0
    %430 = vmatpush2.xpose.msra.mxu0 0.0
    %431 = vmatprep.subr.mxu0 0.0
    %432 = vmatpush2.xpose.msra.mxu0 0.0
    %433 = vmatprep.subr.mxu0 0.0
    %434 = vmatpush2.xpose.msra.mxu0 0.0
    %435 = vmatprep.subr.mxu0 0.0
    %436 = vmatpush2.xpose.msra.mxu0 0.0
    %437 = vmatprep.subr.mxu0 0.0
    %438 = vmatpush2.xpose.msra.mxu0 0.0
    %439 = vmatprep.subr.mxu0 0.0
    %440 = vmatpush2.xpose.msra.mxu0 0.0
    %441 = vmatprep.subr.mxu0 0.0
    %442 = vmatpush2.xpose.msra.mxu0 0.0
    %443 = vmatprep.subr.mxu0 0.0
    %444 = vmatpush2.xpose.msra.mxu0 0.0
    %445 = vmatprep.mubr.f32.mxu0 0.0
    %446 = vmatmul.mubr.f32.gmra.mxu0 %v370
    %v447 = vpop.f32.mrf.mxu0
    %v448 = vadd.f32 0.0, %v447
    %v449 = vpop.f32.mrf.mxu0
    %450 = vmatprep.mubr.f32.mxu0 0.0
    %451 = vmatmul.mubr.f32.gmra.mxu0 %v373
    %v452 = vpop.f32.mrf.mxu0
    %v453 = vadd.f32 0.0, %v452
    %v454 = vpop.f32.mrf.mxu0
    %455 = vdwg.mxu0
    %v456 = vmul.f32 %v448, 0.35355338
    %v457 = vmul.f32 %v453, 0.35355338
    %v458 = vadd.f32 %v456, %v132
    %v459 = vadd.f32 %v457, %v133
    %vm460 = vcmask 130048
    %v461 = vsel %vm460, %v458, -inf
    %462 = vmax.xlane.f32.xlu0 %v461
    %v463 = vpop.xlane.xlu0 %462
    %v464 = vsel %vm460, %v459, -inf
    %465 = vmax.xlane.f32.xlu0 %v464
    %v466 = vpop.xlane.xlu0 %465
    %v467 = vsub.f32 %v458, %v463
    %v468 = vsub.f32 %v459, %v466
    %v469 = vmul.f32 %v467, 1.442695
    %v470 = vpow.pop %v469
    %v471 = vmul.f32 %v468, 1.442695
    %v472 = vpow.pop %v471
    %v473 = vsel %vm460, %v470, 0.0
    %474 = vadd.xlane.f32.xlu0 %v473
    %v475 = vpop.xlane.xlu0 %474
    %v476 = vsel %vm460, %v472, 0.0
    %477 = vadd.xlane.f32.xlu0 %v476
    %v478 = vpop.xlane.xlu0 %477
    %v479 = vrcp.pop %v475
    %v480 = vrcp.pop %v478
    %v481 = vmul.f32 %v470, %v479
    %v482 = vmul.f32 %v472, %v480
    %v484 = vsel %vm460, %v481, 0
    %v487 = vsel %vm460, %v482, 0
    %489 = vmatprep.subr.mxu0 0.0
    %490 = vmatpush1.msra.mxu0 0.0
    %491 = vmatprep.subr.mxu0 0.0
    %492 = vmatpush1.msra.mxu0 0.0
    %493 = vmatprep.subr.mxu0 0.0
    %494 = vmatpush1.msra.mxu0 0.0
    %495 = vmatprep.subr.mxu0 0.0
    %496 = vmatpush1.msra.mxu0 0.0
    %497 = vmatprep.subr.mxu0 0.0
    %498 = vmatpush1.msra.mxu0 0.0
    %499 = vmatprep.subr.mxu0 0.0
    %500 = vmatpush1.msra.mxu0 0.0
    %501 = vmatprep.subr.mxu0 0.0
    %502 = vmatpush1.msra.mxu0 0.0
    %503 = vmatprep.subr.mxu0 0.0
    %504 = vmatpush1.msra.mxu0 0.0
    %505 = vmatprep.subr.mxu0 0.0
    %506 = vmatpush1.msra.mxu0 0.0
    %507 = vmatprep.subr.mxu0 0.0
    %508 = vmatpush1.msra.mxu0 0.0
    %509 = vmatprep.subr.mxu0 0.0
    %510 = vmatpush1.msra.mxu0 0.0
    %511 = vmatprep.subr.mxu0 0.0
    %512 = vmatpush1.msra.mxu0 0.0
    %513 = vmatprep.subr.mxu0 0.0
    %514 = vmatpush1.msra.mxu0 0.0
    %515 = vmatprep.subr.mxu0 0.0
    %516 = vmatpush1.msra.mxu0 0.0
    %517 = vmatprep.subr.mxu0 0.0
    %518 = vmatpush1.msra.mxu0 %v365
    %519 = vmatprep.subr.mxu0 0.0
    %520 = vmatpush1.msra.mxu0 %v360
    %521 = vmatprep.subr.mxu0 0.0
    %522 = vmatpush2.msra.mxu0 0.0
    %523 = vmatprep.subr.mxu0 0.0
    %524 = vmatpush2.msra.mxu0 0.0
    %525 = vmatprep.subr.mxu0 0.0
    %526 = vmatpush2.msra.mxu0 0.0
    %527 = vmatprep.subr.mxu0 0.0
    %528 = vmatpush2.msra.mxu0 0.0
    %529 = vmatprep.subr.mxu0 0.0
    %530 = vmatpush2.msra.mxu0 0.0
    %531 = vmatprep.subr.mxu0 0.0
    %532 = vmatpush2.msra.mxu0 0.0
    %533 = vmatprep.subr.mxu0 0.0
    %534 = vmatpush2.msra.mxu0 0.0
    %535 = vmatprep.subr.mxu0 0.0
    %536 = vmatpush2.msra.mxu0 0.0
    %537 = vmatprep.subr.mxu0 0.0
    %538 = vmatpush2.msra.mxu0 0.0
    %539 = vmatprep.subr.mxu0 0.0
    %540 = vmatpush2.msra.mxu0 0.0
    %541 = vmatprep.subr.mxu0 0.0
    %542 = vmatpush2.msra.mxu0 0.0
    %543 = vmatprep.subr.mxu0 0.0
    %544 = vmatpush2.msra.mxu0 0.0
    %545 = vmatprep.subr.mxu0 0.0
    %546 = vmatpush2.msra.mxu0 0.0
    %547 = vmatprep.subr.mxu0 0.0
    %548 = vmatpush2.msra.mxu0 0.0
    %549 = vmatprep.subr.mxu0 0.0
    %550 = vmatpush2.msra.mxu0 0.0
    %551 = vmatprep.subr.mxu0 0.0
    %552 = vmatpush2.msra.mxu0 0.0
    %553 = vmatprep.mubr.f32.mxu0 0.0
    %554 = vmatmul.mubr.f32.gmra.mxu0 %v484
    %v555 = vpop.f32.mrf.mxu0
    %v556 = vadd.f32 0.0, %v555
    %v557 = vpop.f32.mrf.mxu0
    %558 = vmatprep.mubr.f32.mxu0 0.0
    %559 = vmatmul.mubr.f32.gmra.mxu0 %v487
    %v560 = vpop.f32.mrf.mxu0
    %v561 = vadd.f32 0.0, %v560
    %v562 = vpop.f32.mrf.mxu0
    %563 = vdwg.mxu0
    %564 = vrot.lane.b32.xlu0 %v210, 120
    %v565 = vpop.permute.xlu0 %564
    %566 = vrot.lane.b32.xlu0 %v215, 120
    %v567 = vpop.permute.xlu0 %566
    %568 = vrot.lane.b32.xlu0 %v285, 120
    %v569 = vpop.permute.xlu0 %568
    %570 = vrot.lane.b32.xlu0 %v290, 120
    %v571 = vpop.permute.xlu0 %570
    %v572 = vsel %vm368, %v565, 0
    %v574 = vsel %vm368, %v567, 0
    %v576 = vsel %vm368, %v569, 0
    %v578 = vsel %vm368, %v571, 0
    %580 = vmatprep.subr.mxu0 0.0
    %581 = vmatpush1.xpose.msra.mxu0 0.0
    %582 = vmatprep.subr.mxu0 0.0
    %583 = vmatpush1.xpose.msra.mxu0 0.0
    %584 = vmatprep.subr.mxu0 0.0
    %585 = vmatpush1.xpose.msra.mxu0 0.0
    %586 = vmatprep.subr.mxu0 0.0
    %587 = vmatpush1.xpose.msra.mxu0 0.0
    %588 = vmatprep.subr.mxu0 0.0
    %589 = vmatpush1.xpose.msra.mxu0 0.0
    %590 = vmatprep.subr.mxu0 0.0
    %591 = vmatpush1.xpose.msra.mxu0 0.0
    %592 = vmatprep.subr.mxu0 0.0
    %593 = vmatpush1.xpose.msra.mxu0 0.0
    %594 = vmatprep.subr.mxu0 0.0
    %595 = vmatpush1.xpose.msra.mxu0 0.0
    %596 = vmatprep.subr.mxu0 0.0
    %597 = vmatpush1.xpose.msra.mxu0 0.0
    %598 = vmatprep.subr.mxu0 0.0
    %599 = vmatpush1.xpose.msra.mxu0 0.0
    %600 = vmatprep.subr.mxu0 0.0
    %601 = vmatpush1.xpose.msra.mxu0 0.0
    %602 = vmatprep.subr.mxu0 0.0
    %603 = vmatpush1.xpose.msra.mxu0 0.0
    %604 = vmatprep.subr.mxu0 0.0
    %605 = vmatpush1.xpose.msra.mxu0 0.0
    %606 = vmatprep.subr.mxu0 0.0
    %607 = vmatpush1.xpose.msra.mxu0 0.0
    %608 = vmatprep.subr.mxu0 0.0
    %609 = vmatpush1.xpose.msra.mxu0 %v578
    %610 = vmatprep.subr.mxu0 0.0
    %611 = vmatpush1.xpose.msra.mxu0 %v576
    %612 = vmatprep.subr.mxu0 0.0
    %613 = vmatpush2.xpose.msra.mxu0 0.0
    %614 = vmatprep.subr.mxu0 0.0
    %615 = vmatpush2.xpose.msra.mxu0 0.0
    %616 = vmatprep.subr.mxu0 0.0
    %617 = vmatpush2.xpose.msra.mxu0 0.0
    %618 = vmatprep.subr.mxu0 0.0
    %619 = vmatpush2.xpose.msra.mxu0 0.0
    %620 = vmatprep.subr.mxu0 0.0
    %621 = vmatpush2.xpose.msra.mxu0 0.0
    %622 = vmatprep.subr.mxu0 0.0
    %623 = vmatpush2.xpose.msra.mxu0 0.0
    %624 = vmatprep.subr.mxu0 0.0
    %625 = vmatpush2.xpose.msra.mxu0 0.0
    %626 = vmatprep.subr.mxu0 0.0
    %627 = vmatpush2.xpose.msra.mxu0 0.0
    %628 = vmatprep.subr.mxu0 0.0
    %629 = vmatpush2.xpose.msra.mxu0 0.0
    %630 = vmatprep.subr.mxu0 0.0
    %631 = vmatpush2.xpose.msra.mxu0 0.0
    %632 = vmatprep.subr.mxu0 0.0
    %633 = vmatpush2.xpose.msra.mxu0 0.0
    %634 = vmatprep.subr.mxu0 0.0
    %635 = vmatpush2.xpose.msra.mxu0 0.0
    %636 = vmatprep.subr.mxu0 0.0
    %637 = vmatpush2.xpose.msra.mxu0 0.0
    %638 = vmatprep.subr.mxu0 0.0
    %639 = vmatpush2.xpose.msra.mxu0 0.0
    %640 = vmatprep.subr.mxu0 0.0
    %641 = vmatpush2.xpose.msra.mxu0 0.0
    %642 = vmatprep.subr.mxu0 0.0
    %643 = vmatpush2.xpose.msra.mxu0 0.0
    %644 = vmatprep.mubr.f32.mxu0 0.0
    %645 = vmatmul.mubr.f32.gmra.mxu0 %v572
    %v646 = vpop.f32.mrf.mxu0
    %v647 = vadd.f32 0.0, %v646
    %v648 = vpop.f32.mrf.mxu0
    %649 = vmatprep.mubr.f32.mxu0 0.0
    %650 = vmatmul.mubr.f32.gmra.mxu0 %v574
    %v651 = vpop.f32.mrf.mxu0
    %v652 = vadd.f32 0.0, %v651
    %v653 = vpop.f32.mrf.mxu0
    %654 = vdwg.mxu0
    %v655 = vmul.f32 %v647, 0.35355338
    %v656 = vmul.f32 %v652, 0.35355338
    %v657 = vadd.f32 %v655, %v132
    %v658 = vadd.f32 %v656, %v133
    %v659 = vsel %vm460, %v657, -inf
    %660 = vmax.xlane.f32.xlu0 %v659
    %v661 = vpop.xlane.xlu0 %660
    %v662 = vsel %vm460, %v658, -inf
    %663 = vmax.xlane.f32.xlu0 %v662
    %v664 = vpop.xlane.xlu0 %663
    %v665 = vsub.f32 %v657, %v661
    %v666 = vsub.f32 %v658, %v664
    %v667 = vmul.f32 %v665, 1.442695
    %v668 = vpow.pop %v667
    %v669 = vmul.f32 %v666, 1.442695
    %v670 = vpow.pop %v669
    %v671 = vsel %vm460, %v668, 0.0
    %672 = vadd.xlane.f32.xlu0 %v671
    %v673 = vpop.xlane.xlu0 %672
    %v674 = vsel %vm460, %v670, 0.0
    %675 = vadd.xlane.f32.xlu0 %v674
    %v676 = vpop.xlane.xlu0 %675
    %v677 = vrcp.pop %v673
    %v678 = vrcp.pop %v676
    %v679 = vmul.f32 %v668, %v677
    %v680 = vmul.f32 %v670, %v678
    %683 = vrot.lane.b32.xlu0 %v360, 120
    %v684 = vpop.permute.xlu0 %683
    %685 = vrot.lane.b32.xlu0 %v365, 120
    %v686 = vpop.permute.xlu0 %685
    %v690 = vsel %vm460, %v679, 0
    %v693 = vsel %vm460, %v680, 0
    %695 = vmatprep.subr.mxu0 0.0
    %696 = vmatpush1.msra.mxu0 0.0
    %697 = vmatprep.subr.mxu0 0.0
    %698 = vmatpush1.msra.mxu0 0.0
    %699 = vmatprep.subr.mxu0 0.0
    %700 = vmatpush1.msra.mxu0 0.0
    %701 = vmatprep.subr.mxu0 0.0
    %702 = vmatpush1.msra.mxu0 0.0
    %703 = vmatprep.subr.mxu0 0.0
    %704 = vmatpush1.msra.mxu0 0.0
    %705 = vmatprep.subr.mxu0 0.0
    %706 = vmatpush1.msra.mxu0 0.0
    %707 = vmatprep.subr.mxu0 0.0
    %708 = vmatpush1.msra.mxu0 0.0
    %709 = vmatprep.subr.mxu0 0.0
    %710 = vmatpush1.msra.mxu0 0.0
    %711 = vmatprep.subr.mxu0 0.0
    %712 = vmatpush1.msra.mxu0 0.0
    %713 = vmatprep.subr.mxu0 0.0
    %714 = vmatpush1.msra.mxu0 0.0
    %715 = vmatprep.subr.mxu0 0.0
    %716 = vmatpush1.msra.mxu0 0.0
    %717 = vmatprep.subr.mxu0 0.0
    %718 = vmatpush1.msra.mxu0 0.0
    %719 = vmatprep.subr.mxu0 0.0
    %720 = vmatpush1.msra.mxu0 0.0
    %721 = vmatprep.subr.mxu0 0.0
    %722 = vmatpush1.msra.mxu0 0.0
    %723 = vmatprep.subr.mxu0 0.0
    %724 = vmatpush1.msra.mxu0 %v686
    %725 = vmatprep.subr.mxu0 0.0
    %726 = vmatpush1.msra.mxu0 %v684
    %727 = vmatprep.subr.mxu0 0.0
    %728 = vmatpush2.msra.mxu0 0.0
    %729 = vmatprep.subr.mxu0 0.0
    %730 = vmatpush2.msra.mxu0 0.0
    %731 = vmatprep.subr.mxu0 0.0
    %732 = vmatpush2.msra.mxu0 0.0
    %733 = vmatprep.subr.mxu0 0.0
    %734 = vmatpush2.msra.mxu0 0.0
    %735 = vmatprep.subr.mxu0 0.0
    %736 = vmatpush2.msra.mxu0 0.0
    %737 = vmatprep.subr.mxu0 0.0
    %738 = vmatpush2.msra.mxu0 0.0
    %739 = vmatprep.subr.mxu0 0.0
    %740 = vmatpush2.msra.mxu0 0.0
    %741 = vmatprep.subr.mxu0 0.0
    %742 = vmatpush2.msra.mxu0 0.0
    %743 = vmatprep.subr.mxu0 0.0
    %744 = vmatpush2.msra.mxu0 0.0
    %745 = vmatprep.subr.mxu0 0.0
    %746 = vmatpush2.msra.mxu0 0.0
    %747 = vmatprep.subr.mxu0 0.0
    %748 = vmatpush2.msra.mxu0 0.0
    %749 = vmatprep.subr.mxu0 0.0
    %750 = vmatpush2.msra.mxu0 0.0
    %751 = vmatprep.subr.mxu0 0.0
    %752 = vmatpush2.msra.mxu0 0.0
    %753 = vmatprep.subr.mxu0 0.0
    %754 = vmatpush2.msra.mxu0 0.0
    %755 = vmatprep.subr.mxu0 0.0
    %756 = vmatpush2.msra.mxu0 0.0
    %757 = vmatprep.subr.mxu0 0.0
    %758 = vmatpush2.msra.mxu0 0.0
    %759 = vmatprep.mubr.f32.mxu0 0.0
    %760 = vmatmul.mubr.f32.gmra.mxu0 %v690
    %v761 = vpop.f32.mrf.mxu0
    %v762 = vadd.f32 0.0, %v761
    %v763 = vpop.f32.mrf.mxu0
    %764 = vmatprep.mubr.f32.mxu0 0.0
    %765 = vmatmul.mubr.f32.gmra.mxu0 %v693
    %v766 = vpop.f32.mrf.mxu0
    %v767 = vadd.f32 0.0, %v766
    %v768 = vpop.f32.mrf.mxu0
    %769 = vdwg.mxu0
    %772 = vrot.lane.b32.xlu0 %v762, 8
    %v773 = vpop.permute.xlu0 %772
    %774 = vrot.lane.b32.xlu0 %v767, 8
    %v775 = vpop.permute.xlu0 %774
    %780 = vrot.lane.b32.xlu0 %v556, 16
    %v781 = vpop.permute.xlu0 %780
    %782 = vrot.lane.b32.xlu0 %v561, 16
    %v783 = vpop.permute.xlu0 %782
    %786 = vrot.lane.b32.xlu0 %v762, 24
    %v787 = vpop.permute.xlu0 %786
    %788 = vrot.lane.b32.xlu0 %v767, 24
    %v789 = vpop.permute.xlu0 %788
    %v792 = vsel %vm368, %v556, %v773
    %v793 = vsel %vm368, %v561, %v775
    %v794 = vsel %vm460, %v792, %v781
    %v795 = vsel %vm460, %v793, %v783
    %vm796 = vcmask 195584
    %v797 = vsel %vm796, %v794, %v787
    %v798 = vsel %vm796, %v795, %v789
    %799 = vmatprep.subr.mxu0 0.0
    %800 = vmatpush1.msra.mxu0 0.0
    %801 = vmatprep.subr.mxu0 0.0
    %802 = vmatpush1.msra.mxu0 0.0
    %803 = vmatprep.subr.mxu0 0.0
    %804 = vmatpush1.msra.mxu0 0.0
    %805 = vmatprep.subr.mxu0 0.0
    %806 = vmatpush1.msra.mxu0 0.0
    %807 = vmatprep.subr.mxu0 0.0
    %808 = vmatpush1.msra.mxu0 0.0
    %809 = vmatprep.subr.mxu0 0.0
    %810 = vmatpush1.msra.mxu0 0.0
    %811 = vmatprep.subr.mxu0 0.0
    %812 = vmatpush1.msra.mxu0 0.0
    %813 = vmatprep.subr.mxu0 0.0
    %814 = vmatpush1.msra.mxu0 0.0
    %815 = vmatprep.subr.mxu0 0.0
    %816 = vmatpush1.msra.mxu0 0.0
    %817 = vmatprep.subr.mxu0 0.0
    %818 = vmatpush1.msra.mxu0 0.0
    %819 = vmatprep.subr.mxu0 0.0
    %820 = vmatpush1.msra.mxu0 0.0
    %821 = vmatprep.subr.mxu0 0.0
    %822 = vmatpush1.msra.mxu0 0.0
    %823 = vmatprep.subr.mxu0 0.0
    %824 = vmatpush1.msra.mxu0 %v66
    %825 = vmatprep.subr.mxu0 0.0
    %826 = vmatpush1.msra.mxu0 %v65
    %827 = vmatprep.subr.mxu0 0.0
    %828 = vmatpush1.msra.mxu0 %v64
    %829 = vmatprep.subr.mxu0 0.0
    %830 = vmatpush1.msra.mxu0 %v63
    %831 = vmatprep.subr.mxu0 0.0
    %832 = vmatpush2.msra.mxu0 0.0
    %833 = vmatprep.subr.mxu0 0.0
    %834 = vmatpush2.msra.mxu0 0.0
    %835 = vmatprep.subr.mxu0 0.0
    %836 = vmatpush2.msra.mxu0 0.0
    %837 = vmatprep.subr.mxu0 0.0
    %838 = vmatpush2.msra.mxu0 0.0
    %839 = vmatprep.subr.mxu0 0.0
    %840 = vmatpush2.msra.mxu0 0.0
    %841 = vmatprep.subr.mxu0 0.0
    %842 = vmatpush2.msra.mxu0 0.0
    %843 = vmatprep.subr.mxu0 0.0
    %844 = vmatpush2.msra.mxu0 0.0
    %845 = vmatprep.subr.mxu0 0.0
    %846 = vmatpush2.msra.mxu0 0.0
    %847 = vmatprep.subr.mxu0 0.0
    %848 = vmatpush2.msra.mxu0 0.0
    %849 = vmatprep.subr.mxu0 0.0
    %850 = vmatpush2.msra.mxu0 0.0
    %851 = vmatprep.subr.mxu0 0.0
    %852 = vmatpush2.msra.mxu0 0.0
    %853 = vmatprep.subr.mxu0 0.0
    %854 = vmatpush2.msra.mxu0 0.0
    %855 = vmatprep.subr.mxu0 0.0
    %856 = vmatpush2.msra.mxu0 0.0
    %857 = vmatprep.subr.mxu0 0.0
    %858 = vmatpush2.msra.mxu0 0.0
    %859 = vmatprep.subr.mxu0 0.0
    %860 = vmatpush2.msra.mxu0 0.0
    %861 = vmatprep.subr.mxu0 0.0
    %862 = vmatpush2.msra.mxu0 0.0
    %863 = vmatprep.mubr.f32.mxu0 0.0
    %864 = vmatmul.mubr.f32.gmra.mxu0 %v138
    %v865 = vpop.f32.mrf.mxu0
    %v866 = vadd.f32 %v84, %v865
    %v867 = vpop.f32.mrf.mxu0
    %868 = vmatprep.mubr.f32.mxu0 0.0
    %869 = vmatmul.mubr.f32.gmra.mxu0 %v141
    %v870 = vpop.f32.mrf.mxu0
    %v871 = vadd.f32 %v84, %v870
    %v872 = vpop.f32.mrf.mxu0
    %873 = vdwg.mxu0
    %v874 = vadd.f32 %v866, %v797
    %v875 = vadd.f32 %v871, %v798
    %v876 = vsel %vm136, %v874, 0.0
    %877 = vadd.xlane.f32.xlu0 %v876
    %v878 = vpop.xlane.xlu0 %877
    %v879 = vsel %vm136, %v875, 0.0
    %880 = vadd.xlane.f32.xlu0 %v879
    %v881 = vpop.xlane.xlu0 %880
    %v882 = vrcp.pop 32.0
    %v883 = vmul.f32 %v878, %v882
    %v884 = vmul.f32 %v881, %v882
    %v885 = vsub.f32 %v874, %v883
    %v886 = vsub.f32 %v875, %v884
    %v887 = vmul.f32 %v885, %v885
    %v888 = vmul.f32 %v886, %v886
    %v889 = vsel %vm136, %v887, 0.0
    %890 = vadd.xlane.f32.xlu0 %v889
    %v891 = vpop.xlane.xlu0 %890
    %v892 = vsel %vm136, %v888, 0.0
    %893 = vadd.xlane.f32.xlu0 %v892
    %v894 = vpop.xlane.xlu0 %893
    %v895 = vmul.f32 %v891, %v882
    %v896 = vmul.f32 %v894, %v882
    %v897 = vadd.f32 %v895, 1e-12
    %v898 = vadd.f32 %v896, 1e-12
    %v899 = vrsqrt.pop %v897
    %v900 = vrsqrt.pop %v898
    %v901 = vmul.f32 %v885, %v899
    %v902 = vmul.f32 %v886, %v900
    %v903 = vmul.f32 %v105, %v901
    %v904 = vmul.f32 %v105, %v902
    %v905 = vadd.f32 %v903, %v112
    %v906 = vadd.f32 %v904, %v112
    %v908 = vsel %vm136, %v905, 0
    %v911 = vsel %vm136, %v906, 0
    %913 = vmatprep.subr.mxu0 0.0
    %914 = vmatpush1.msra.mxu0 0.0
    %915 = vmatprep.subr.mxu0 0.0
    %916 = vmatpush1.msra.mxu0 0.0
    %917 = vmatprep.subr.mxu0 0.0
    %918 = vmatpush1.msra.mxu0 0.0
    %919 = vmatprep.subr.mxu0 0.0
    %920 = vmatpush1.msra.mxu0 0.0
    %921 = vmatprep.subr.mxu0 0.0
    %922 = vmatpush1.msra.mxu0 0.0
    %923 = vmatprep.subr.mxu0 0.0
    %924 = vmatpush1.msra.mxu0 0.0
    %925 = vmatprep.subr.mxu0 0.0
    %926 = vmatpush1.msra.mxu0 0.0
    %927 = vmatprep.subr.mxu0 0.0
    %928 = vmatpush1.msra.mxu0 0.0
    %929 = vmatprep.subr.mxu0 0.0
    %930 = vmatpush1.msra.mxu0 0.0
    %931 = vmatprep.subr.mxu0 0.0
    %932 = vmatpush1.msra.mxu0 0.0
    %933 = vmatprep.subr.mxu0 0.0
    %934 = vmatpush1.msra.mxu0 0.0
    %935 = vmatprep.subr.mxu0 0.0
    %936 = vmatpush1.msra.mxu0 0.0
    %937 = vmatprep.subr.mxu0 0.0
    %938 = vmatpush1.msra.mxu0 %v70
    %939 = vmatprep.subr.mxu0 0.0
    %940 = vmatpush1.msra.mxu0 %v69
    %941 = vmatprep.subr.mxu0 0.0
    %942 = vmatpush1.msra.mxu0 %v68
    %943 = vmatprep.subr.mxu0 0.0
    %944 = vmatpush1.msra.mxu0 %v67
    %945 = vmatprep.subr.mxu0 0.0
    %946 = vmatpush2.msra.mxu0 0.0
    %947 = vmatprep.subr.mxu0 0.0
    %948 = vmatpush2.msra.mxu0 0.0
    %949 = vmatprep.subr.mxu0 0.0
    %950 = vmatpush2.msra.mxu0 0.0
    %951 = vmatprep.subr.mxu0 0.0
    %952 = vmatpush2.msra.mxu0 0.0
    %953 = vmatprep.subr.mxu0 0.0
    %954 = vmatpush2.msra.mxu0 0.0
    %955 = vmatprep.subr.mxu0 0.0
    %956 = vmatpush2.msra.mxu0 0.0
    %957 = vmatprep.subr.mxu0 0.0
    %958 = vmatpush2.msra.mxu0 0.0
    %959 = vmatprep.subr.mxu0 0.0
    %960 = vmatpush2.msra.mxu0 0.0
    %961 = vmatprep.subr.mxu0 0.0
    %962 = vmatpush2.msra.mxu0 0.0
    %963 = vmatprep.subr.mxu0 0.0
    %964 = vmatpush2.msra.mxu0 0.0
    %965 = vmatprep.subr.mxu0 0.0
    %966 = vmatpush2.msra.mxu0 0.0
    %967 = vmatprep.subr.mxu0 0.0
    %968 = vmatpush2.msra.mxu0 0.0
    %969 = vmatprep.subr.mxu0 0.0
    %970 = vmatpush2.msra.mxu0 0.0
    %971 = vmatprep.subr.mxu0 0.0
    %972 = vmatpush2.msra.mxu0 0.0
    %973 = vmatprep.subr.mxu0 0.0
    %974 = vmatpush2.msra.mxu0 0.0
    %975 = vmatprep.subr.mxu0 0.0
    %976 = vmatpush2.msra.mxu0 0.0
    %977 = vmatprep.mubr.f32.mxu0 0.0
    %978 = vmatmul.mubr.f32.gmra.mxu0 %v908
    %v979 = vpop.f32.mrf.mxu0
    %v980 = vadd.f32 %v91, %v979
    %v981 = vpop.f32.mrf.mxu0
    %982 = vmatprep.mubr.f32.mxu0 0.0
    %983 = vmatmul.mubr.f32.gmra.mxu0 %v911
    %v984 = vpop.f32.mrf.mxu0
    %v985 = vadd.f32 %v91, %v984
    %v986 = vpop.f32.mrf.mxu0
    %987 = vdwg.mxu0
    %v988 = vmul.f32 %v980, 0.5
    %v989 = vmul.f32 %v985, 0.5
    %v990 = vmul.f32 %v980, 0.044715
    %v991 = vmul.f32 %v985, 0.044715
    %v992 = vmul.f32 %v990, %v980
    %v993 = vmul.f32 %v991, %v985
    %v994 = vmul.f32 %v992, %v980
    %v995 = vmul.f32 %v993, %v985
    %v996 = vadd.f32 %v980, %v994
    %v997 = vadd.f32 %v985, %v995
    %v998 = vmul.f32 %v996, 0.7978846
    %v999 = vmul.f32 %v997, 0.7978846
    %v1000 = vtanh.pop %v998
    %v1001 = vtanh.pop %v999
    %v1002 = vadd.f32 %v1000, 1.0
    %v1003 = vadd.f32 %v1001, 1.0
    %v1004 = vmul.f32 %v988, %v1002
    %v1005 = vmul.f32 %v989, %v1003
    %vm1006 = vcmask 523264
    %v1008 = vsel %vm1006, %v1004, 0
    %v1011 = vsel %vm1006, %v1005, 0
    %1013 = vmatprep.subr.mxu0 0.0
    %1014 = vmatpush1.msra.mxu0 0.0
    %1015 = vmatprep.subr.mxu0 0.0
    %1016 = vmatpush1.msra.mxu0 0.0
    %1017 = vmatprep.subr.mxu0 0.0
    %1018 = vmatpush1.msra.mxu0 0.0
    %1019 = vmatprep.subr.mxu0 0.0
    %1020 = vmatpush1.msra.mxu0 0.0
    %1021 = vmatprep.subr.mxu0 0.0
    %1022 = vmatpush1.msra.mxu0 0.0
    %1023 = vmatprep.subr.mxu0 0.0
    %1024 = vmatpush1.msra.mxu0 0.0
    %1025 = vmatprep.subr.mxu0 0.0
    %1026 = vmatpush1.msra.mxu0 0.0
    %1027 = vmatprep.subr.mxu0 0.0
    %1028 = vmatpush1.msra.mxu0 0.0
    %1029 = vmatprep.subr.mxu0 0.0
    %1030 = vmatpush1.msra.mxu0 %v78
    %1031 = vmatprep.subr.mxu0 0.0
    %1032 = vmatpush1.msra.mxu0 %v77
    %1033 = vmatprep.subr.mxu0 0.0
    %1034 = vmatpush1.msra.mxu0 %v76
    %1035 = vmatprep.subr.mxu0 0.0
    %1036 = vmatpush1.msra.mxu0 %v75
    %1037 = vmatprep.subr.mxu0 0.0
    %1038 = vmatpush1.msra.mxu0 %v74
    %1039 = vmatprep.subr.mxu0 0.0
    %1040 = vmatpush1.msra.mxu0 %v73
    %1041 = vmatprep.subr.mxu0 0.0
    %1042 = vmatpush1.msra.mxu0 %v72
    %1043 = vmatprep.subr.mxu0 0.0
    %1044 = vmatpush1.msra.mxu0 %v71
    %1045 = vmatprep.subr.mxu0 0.0
    %1046 = vmatpush2.msra.mxu0 0.0
    %1047 = vmatprep.subr.mxu0 0.0
    %1048 = vmatpush2.msra.mxu0 0.0
    %1049 = vmatprep.subr.mxu0 0.0
    %1050 = vmatpush2.msra.mxu0 0.0
    %1051 = vmatprep.subr.mxu0 0.0
    %1052 = vmatpush2.msra.mxu0 0.0
    %1053 = vmatprep.subr.mxu0 0.0
    %1054 = vmatpush2.msra.mxu0 0.0
    %1055 = vmatprep.subr.mxu0 0.0
    %1056 = vmatpush2.msra.mxu0 0.0
    %1057 = vmatprep.subr.mxu0 0.0
    %1058 = vmatpush2.msra.mxu0 0.0
    %1059 = vmatprep.subr.mxu0 0.0
    %1060 = vmatpush2.msra.mxu0 0.0
    %1061 = vmatprep.subr.mxu0 0.0
    %1062 = vmatpush2.msra.mxu0 0.0
    %1063 = vmatprep.subr.mxu0 0.0
    %1064 = vmatpush2.msra.mxu0 0.0
    %1065 = vmatprep.subr.mxu0 0.0
    %1066 = vmatpush2.msra.mxu0 0.0
    %1067 = vmatprep.subr.mxu0 0.0
    %1068 = vmatpush2.msra.mxu0 0.0
    %1069 = vmatprep.subr.mxu0 0.0
    %1070 = vmatpush2.msra.mxu0 0.0
    %1071 = vmatprep.subr.mxu0 0.0
    %1072 = vmatpush2.msra.mxu0 0.0
    %1073 = vmatprep.subr.mxu0 0.0
    %1074 = vmatpush2.msra.mxu0 0.0
    %1075 = vmatprep.subr.mxu0 0.0
    %1076 = vmatpush2.msra.mxu0 0.0
    %1077 = vmatprep.mubr.f32.mxu0 0.0
    %1078 = vmatmul.mubr.f32.gmra.mxu0 %v1008
    %v1079 = vpop.f32.mrf.mxu0
    %v1080 = vadd.f32 %v98, %v1079
    %v1081 = vpop.f32.mrf.mxu0
    %1082 = vmatprep.mubr.f32.mxu0 0.0
    %1083 = vmatmul.mubr.f32.gmra.mxu0 %v1011
    %v1084 = vpop.f32.mrf.mxu0
    %v1085 = vadd.f32 %v98, %v1084
    %v1086 = vpop.f32.mrf.mxu0
    %1087 = vdwg.mxu0
    %v1088 = vadd.f32 %v1080, %v905
    %v1089 = vadd.f32 %v1085, %v906
    %v1090 = vsel %vm136, %v1088, 0.0
    %1091 = vadd.xlane.f32.xlu0 %v1090
    %v1092 = vpop.xlane.xlu0 %1091
    %v1093 = vsel %vm136, %v1089, 0.0
    %1094 = vadd.xlane.f32.xlu0 %v1093
    %v1095 = vpop.xlane.xlu0 %1094
    %v1096 = vmul.f32 %v1092, %v882
    %v1097 = vmul.f32 %v1095, %v882
    %v1098 = vsub.f32 %v1088, %v1096
    %v1099 = vsub.f32 %v1089, %v1097
    %v1100 = vmul.f32 %v1098, %v1098
    %v1101 = vmul.f32 %v1099, %v1099
    %v1102 = vsel %vm136, %v1100, 0.0
    %1103 = vadd.xlane.f32.xlu0 %v1102
    %v1104 = vpop.xlane.xlu0 %1103
    %v1105 = vsel %vm136, %v1101, 0.0
    %1106 = vadd.xlane.f32.xlu0 %v1105
    %v1107 = vpop.xlane.xlu0 %1106
    %v1108 = vmul.f32 %v1104, %v882
    %v1109 = vmul.f32 %v1107, %v882
    %v1110 = vadd.f32 %v1108, 1e-12
    %v1111 = vadd.f32 %v1109, 1e-12
    %v1112 = vrsqrt.pop %v1110
    %v1113 = vrsqrt.pop %v1111
    %v1114 = vmul.f32 %v1098, %v1112
    %v1115 = vmul.f32 %v1099, %v1113
    %v1116 = vmul.f32 %v119, %v1114
    %v1117 = vmul.f32 %v119, %v1115
    %v1118 = vadd.f32 %v1116, %v126
    %v1119 = vadd.f32 %v1117, %v126
    %1120 = vst.msk [vmem:[#allocation2] sm:$0xff] %vm136, %v1118
    %1121 = vst.msk [vmem:[#allocation2 + $0x8] sm:$0xff] %vm136, %v1119
    %v1123 = vsel %vm136, %v1118, 0
    %v1126 = vsel %vm136, %v1119, 0
    %1128 = vmatprep.subr.mxu0 0.0
    %1129 = vmatpush1.msra.mxu0 0.0
    %1130 = vmatprep.subr.mxu0 0.0
    %1131 = vmatpush1.msra.mxu0 0.0
    %1132 = vmatprep.subr.mxu0 0.0
    %1133 = vmatpush1.msra.mxu0 0.0
    %1134 = vmatprep.subr.mxu0 0.0
    %1135 = vmatpush1.msra.mxu0 0.0
    %1136 = vmatprep.subr.mxu0 0.0
    %1137 = vmatpush1.msra.mxu0 0.0
    %1138 = vmatprep.subr.mxu0 0.0
    %1139 = vmatpush1.msra.mxu0 0.0
    %1140 = vmatprep.subr.mxu0 0.0
    %1141 = vmatpush1.msra.mxu0 0.0
    %1142 = vmatprep.subr.mxu0 0.0
    %1143 = vmatpush1.msra.mxu0 0.0
    %1144 = vmatprep.subr.mxu0 0.0
    %1145 = vmatpush1.msra.mxu0 0.0
    %1146 = vmatprep.subr.mxu0 0.0
    %1147 = vmatpush1.msra.mxu0 0.0
    %1148 = vmatprep.subr.mxu0 0.0
    %1149 = vmatpush1.msra.mxu0 0.0
    %1150 = vmatprep.subr.mxu0 0.0
    %1151 = vmatpush1.msra.mxu0 0.0
    %1152 = vmatprep.subr.mxu0 0.0
    %1153 = vmatpush1.msra.mxu0 %v54
    %1154 = vmatprep.subr.mxu0 0.0
    %1155 = vmatpush1.msra.mxu0 %v53
    %1156 = vmatprep.subr.mxu0 0.0
    %1157 = vmatpush1.msra.mxu0 %v52
    %1158 = vmatprep.subr.mxu0 0.0
    %1159 = vmatpush1.msra.mxu0 %v51
    %1160 = vmatprep.subr.mxu0 0.0
    %1161 = vmatpush2.msra.mxu0 0.0
    %1162 = vmatprep.subr.mxu0 0.0
    %1163 = vmatpush2.msra.mxu0 0.0
    %1164 = vmatprep.subr.mxu0 0.0
    %1165 = vmatpush2.msra.mxu0 0.0
    %1166 = vmatprep.subr.mxu0 0.0
    %1167 = vmatpush2.msra.mxu0 0.0
    %1168 = vmatprep.subr.mxu0 0.0
    %1169 = vmatpush2.msra.mxu0 0.0
    %1170 = vmatprep.subr.mxu0 0.0
    %1171 = vmatpush2.msra.mxu0 0.0
    %1172 = vmatprep.subr.mxu0 0.0
    %1173 = vmatpush2.msra.mxu0 0.0
    %1174 = vmatprep.subr.mxu0 0.0
    %1175 = vmatpush2.msra.mxu0 0.0
    %1176 = vmatprep.subr.mxu0 0.0
    %1177 = vmatpush2.msra.mxu0 0.0
    %1178 = vmatprep.subr.mxu0 0.0
    %1179 = vmatpush2.msra.mxu0 0.0
    %1180 = vmatprep.subr.mxu0 0.0
    %1181 = vmatpush2.msra.mxu0 0.0
    %1182 = vmatprep.subr.mxu0 0.0
    %1183 = vmatpush2.msra.mxu0 0.0
    %1184 = vmatprep.subr.mxu0 0.0
    %1185 = vmatpush2.msra.mxu0 0.0
    %1186 = vmatprep.subr.mxu0 0.0
    %1187 = vmatpush2.msra.mxu0 0.0
    %1188 = vmatprep.subr.mxu0 0.0
    %1189 = vmatpush2.msra.mxu0 0.0
    %1190 = vmatprep.subr.mxu0 0.0
    %1191 = vmatpush2.msra.mxu0 0.0
    %1192 = vmatprep.mubr.f32.mxu0 0.0
    %1193 = vmatmul.mubr.f32.gmra.mxu0 %v1123
    %v1194 = vpop.f32.mrf.mxu0
    %v1195 = vadd.f32 0.0, %v1194
    %v1196 = vpop.f32.mrf.mxu0
    %1197 = vmatprep.mubr.f32.mxu0 0.0
    %1198 = vmatmul.mubr.f32.gmra.mxu0 %v1126
    %v1199 = vpop.f32.mrf.mxu0
    %v1200 = vadd.f32 0.0, %v1199
    %v1201 = vpop.f32.mrf.mxu0
    %1202 = vdwg.mxu0
    %1203 = vmatprep.subr.mxu0 0.0
    %1204 = vmatpush1.msra.mxu0 0.0
    %1205 = vmatprep.subr.mxu0 0.0
    %1206 = vmatpush1.msra.mxu0 0.0
    %1207 = vmatprep.subr.mxu0 0.0
    %1208 = vmatpush1.msra.mxu0 0.0
    %1209 = vmatprep.subr.mxu0 0.0
    %1210 = vmatpush1.msra.mxu0 0.0
    %1211 = vmatprep.subr.mxu0 0.0
    %1212 = vmatpush1.msra.mxu0 0.0
    %1213 = vmatprep.subr.mxu0 0.0
    %1214 = vmatpush1.msra.mxu0 0.0
    %1215 = vmatprep.subr.mxu0 0.0
    %1216 = vmatpush1.msra.mxu0 0.0
    %1217 = vmatprep.subr.mxu0 0.0
    %1218 = vmatpush1.msra.mxu0 0.0
    %1219 = vmatprep.subr.mxu0 0.0
    %1220 = vmatpush1.msra.mxu0 0.0
    %1221 = vmatprep.subr.mxu0 0.0
    %1222 = vmatpush1.msra.mxu0 0.0
    %1223 = vmatprep.subr.mxu0 0.0
    %1224 = vmatpush1.msra.mxu0 0.0
    %1225 = vmatprep.subr.mxu0 0.0
    %1226 = vmatpush1.msra.mxu0 0.0
    %1227 = vmatprep.subr.mxu0 0.0
    %1228 = vmatpush1.msra.mxu0 %v58
    %1229 = vmatprep.subr.mxu0 0.0
    %1230 = vmatpush1.msra.mxu0 %v57
    %1231 = vmatprep.subr.mxu0 0.0
    %1232 = vmatpush1.msra.mxu0 %v56
    %1233 = vmatprep.subr.mxu0 0.0
    %1234 = vmatpush1.msra.mxu0 %v55
    %1235 = vmatprep.subr.mxu0 0.0
    %1236 = vmatpush2.msra.mxu0 0.0
    %1237 = vmatprep.subr.mxu0 0.0
    %1238 = vmatpush2.msra.mxu0 0.0
    %1239 = vmatprep.subr.mxu0 0.0
    %1240 = vmatpush2.msra.mxu0 0.0
    %1241 = vmatprep.subr.mxu0 0.0
    %1242 = vmatpush2.msra.mxu0 0.0
    %1243 = vmatprep.subr.mxu0 0.0
    %1244 = vmatpush2.msra.mxu0 0.0
    %1245 = vmatprep.subr.mxu0 0.0
    %1246 = vmatpush2.msra.mxu0 0.0
    %1247 = vmatprep.subr.mxu0 0.0
    %1248 = vmatpush2.msra.mxu0 0.0
    %1249 = vmatprep.subr.mxu0 0.0
    %1250 = vmatpush2.msra.mxu0 0.0
    %1251 = vmatprep.subr.mxu0 0.0
    %1252 = vmatpush2.msra.mxu0 0.0
    %1253 = vmatprep.subr.mxu0 0.0
    %1254 = vmatpush2.msra.mxu0 0.0
    %1255 = vmatprep.subr.mxu0 0.0
    %1256 = vmatpush2.msra.mxu0 0.0
    %1257 = vmatprep.subr.mxu0 0.0
    %1258 = vmatpush2.msra.mxu0 0.0
    %1259 = vmatprep.subr.mxu0 0.0
    %1260 = vmatpush2.msra.mxu0 0.0
    %1261 = vmatprep.subr.mxu0 0.0
    %1262 = vmatpush2.msra.mxu0 0.0
    %1263 = vmatprep.subr.mxu0 0.0
    %1264 = vmatpush2.msra.mxu0 0.0
    %1265 = vmatprep.subr.mxu0 0.0
    %1266 = vmatpush2.msra.mxu0 0.0
    %1267 = vmatprep.mubr.f32.mxu0 0.0
    %1268 = vmatmul.mubr.f32.gmra.mxu0 %v1123
    %v1269 = vpop.f32.mrf.mxu0
    %v1270 = vadd.f32 0.0, %v1269
    %v1271 = vpop.f32.mrf.mxu0
    %1272 = vmatprep.mubr.f32.mxu0 0.0
    %1273 = vmatmul.mubr.f32.gmra.mxu0 %v1126
    %v1274 = vpop.f32.mrf.mxu0
    %v1275 = vadd.f32 0.0, %v1274
    %v1276 = vpop.f32.mrf.mxu0
    %1277 = vdwg.mxu0
    %1278 = vmatprep.subr.mxu0 0.0
    %1279 = vmatpush1.msra.mxu0 0.0
    %1280 = vmatprep.subr.mxu0 0.0
    %1281 = vmatpush1.msra.mxu0 0.0
    %1282 = vmatprep.subr.mxu0 0.0
    %1283 = vmatpush1.msra.mxu0 0.0
    %1284 = vmatprep.subr.mxu0 0.0
    %1285 = vmatpush1.msra.mxu0 0.0
    %1286 = vmatprep.subr.mxu0 0.0
    %1287 = vmatpush1.msra.mxu0 0.0
    %1288 = vmatprep.subr.mxu0 0.0
    %1289 = vmatpush1.msra.mxu0 0.0
    %1290 = vmatprep.subr.mxu0 0.0
    %1291 = vmatpush1.msra.mxu0 0.0
    %1292 = vmatprep.subr.mxu0 0.0
    %1293 = vmatpush1.msra.mxu0 0.0
    %1294 = vmatprep.subr.mxu0 0.0
    %1295 = vmatpush1.msra.mxu0 0.0
    %1296 = vmatprep.subr.mxu0 0.0
    %1297 = vmatpush1.msra.mxu0 0.0
    %1298 = vmatprep.subr.mxu0 0.0
    %1299 = vmatpush1.msra.mxu0 0.0
    %1300 = vmatprep.subr.mxu0 0.0
    %1301 = vmatpush1.msra.mxu0 0.0
    %1302 = vmatprep.subr.mxu0 0.0
    %1303 = vmatpush1.msra.mxu0 %v62
    %1304 = vmatprep.subr.mxu0 0.0
    %1305 = vmatpush1.msra.mxu0 %v61
    %1306 = vmatprep.subr.mxu0 0.0
    %1307 = vmatpush1.msra.mxu0 %v60
    %1308 = vmatprep.subr.mxu0 0.0
    %1309 = vmatpush1.msra.mxu0 %v59
    %1310 = vmatprep.subr.mxu0 0.0
    %1311 = vmatpush2.msra.mxu0 0.0
    %1312 = vmatprep.subr.mxu0 0.0
    %1313 = vmatpush2.msra.mxu0 0.0
    %1314 = vmatprep.subr.mxu0 0.0
    %1315 = vmatpush2.msra.mxu0 0.0
    %1316 = vmatprep.subr.mxu0 0.0
    %1317 = vmatpush2.msra.mxu0 0.0
    %1318 = vmatprep.subr.mxu0 0.0
    %1319 = vmatpush2.msra.mxu0 0.0
    %1320 = vmatprep.subr.mxu0 0.0
    %1321 = vmatpush2.msra.mxu0 0.0
    %1322 = vmatprep.subr.mxu0 0.0
    %1323 = vmatpush2.msra.mxu0 0.0
    %1324 = vmatprep.subr.mxu0 0.0
    %1325 = vmatpush2.msra.mxu0 0.0
    %1326 = vmatprep.subr.mxu0 0.0
    %1327 = vmatpush2.msra.mxu0 0.0
    %1328 = vmatprep.subr.mxu0 0.0
    %1329 = vmatpush2.msra.mxu0 0.0
    %1330 = vmatprep.subr.mxu0 0.0
    %1331 = vmatpush2.msra.mxu0 0.0
    %1332 = vmatprep.subr.mxu0 0.0
    %1333 = vmatpush2.msra.mxu0 0.0
    %1334 = vmatprep.subr.mxu0 0.0
    %1335 = vmatpush2.msra.mxu0 0.0
    %1336 = vmatprep.subr.mxu0 0.0
    %1337 = vmatpush2.msra.mxu0 0.0
    %1338 = vmatprep.subr.mxu0 0.0
    %1339 = vmatpush2.msra.mxu0 0.0
    %1340 = vmatprep.subr.mxu0 0.0
    %1341 = vmatpush2.msra.mxu0 0.0
    %1342 = vmatprep.mubr.f32.mxu0 0.0
    %1343 = vmatmul.mubr.f32.gmra.mxu0 %v1123
    %v1344 = vpop.f32.mrf.mxu0
    %v1345 = vadd.f32 0.0, %v1344
    %v1346 = vpop.f32.mrf.mxu0
    %1347 = vmatprep.mubr.f32.mxu0 0.0
    %1348 = vmatmul.mubr.f32.gmra.mxu0 %v1126
    %v1349 = vpop.f32.mrf.mxu0
    %v1350 = vadd.f32 0.0, %v1349
    %v1351 = vpop.f32.mrf.mxu0
    %1352 = vdwg.mxu0
    %v1354 = vsel %vm368, %v1195, 0
    %v1357 = vsel %vm368, %v1200, 0
    %v1360 = vsel %vm368, %v1270, 0
    %v1363 = vsel %vm368, %v1275, 0
    %1365 = vmatprep.subr.mxu0 0.0
    %1366 = vmatpush1.xpose.msra.mxu0 0.0
    %1367 = vmatprep.subr.mxu0 0.0
    %1368 = vmatpush1.xpose.msra.mxu0 0.0
    %1369 = vmatprep.subr.mxu0 0.0
    %1370 = vmatpush1.xpose.msra.mxu0 0.0
    %1371 = vmatprep.subr.mxu0 0.0
    %1372 = vmatpush1.xpose.msra.mxu0 0.0
    %1373 = vmatprep.subr.mxu0 0.0
    %1374 = vmatpush1.xpose.msra.mxu0 0.0
    %1375 = vmatprep.subr.mxu0 0.0
    %1376 = vmatpush1.xpose.msra.mxu0 0.0
    %1377 = vmatprep.subr.mxu0 0.0
    %1378 = vmatpush1.xpose.msra.mxu0 0.0
    %1379 = vmatprep.subr.mxu0 0.0
    %1380 = vmatpush1.xpose.msra.mxu0 0.0
    %1381 = vmatprep.subr.mxu0 0.0
    %1382 = vmatpush1.xpose.msra.mxu0 0.0
    %1383 = vmatprep.subr.mxu0 0.0
    %1384 = vmatpush1.xpose.msra.mxu0 0.0
    %1385 = vmatprep.subr.mxu0 0.0
    %1386 = vmatpush1.xpose.msra.mxu0 0.0
    %1387 = vmatprep.subr.mxu0 0.0
    %1388 = vmatpush1.xpose.msra.mxu0 0.0
    %1389 = vmatprep.subr.mxu0 0.0
    %1390 = vmatpush1.xpose.msra.mxu0 0.0
    %1391 = vmatprep.subr.mxu0 0.0
    %1392 = vmatpush1.xpose.msra.mxu0 0.0
    %1393 = vmatprep.subr.mxu0 0.0
    %1394 = vmatpush1.xpose.msra.mxu0 %v1363
    %1395 = vmatprep.subr.mxu0 0.0
    %1396 = vmatpush1.xpose.msra.mxu0 %v1360
    %1397 = vmatprep.subr.mxu0 0.0
    %1398 = vmatpush2.xpose.msra.mxu0 0.0
    %1399 = vmatprep.subr.mxu0 0.0
    %1400 = vmatpush2.xpose.msra.mxu0 0.0
    %1401 = vmatprep.subr.mxu0 0.0
    %1402 = vmatpush2.xpose.msra.mxu0 0.0
    %1403 = vmatprep.subr.mxu0 0.0
    %1404 = vmatpush2.xpose.msra.mxu0 0.0
    %1405 = vmatprep.subr.mxu0 0.0
    %1406 = vmatpush2.xpose.msra.mxu0 0.0
    %1407 = vmatprep.subr.mxu0 0.0
    %1408 = vmatpush2.xpose.msra.mxu0 0.0
    %1409 = vmatprep.subr.mxu0 0.0
    %1410 = vmatpush2.xpose.msra.mxu0 0.0
    %1411 = vmatprep.subr.mxu0 0.0
    %1412 = vmatpush2.xpose.msra.mxu0 0.0
    %1413 = vmatprep.subr.mxu0 0.0
    %1414 = vmatpush2.xpose.msra.mxu0 0.0
    %1415 = vmatprep.subr.mxu0 0.0
    %1416 = vmatpush2.xpose.msra.mxu0 0.0
    %1417 = vmatprep.subr.mxu0 0.0
    %1418 = vmatpush2.xpose.msra.mxu0 0.0
    %1419 = vmatprep.subr.mxu0 0.0
    %1420 = vmatpush2.xpose.msra.mxu0 0.0
    %1421 = vmatprep.subr.mxu0 0.0
    %1422 = vmatpush2.xpose.msra.mxu0 0.0
    %1423 = vmatprep.subr.mxu0 0.0
    %1424 = vmatpush2.xpose.msra.mxu0 0.0
    %1425 = vmatprep.subr.mxu0 0.0
    %1426 = vmatpush2.xpose.msra.mxu0 0.0
    %1427 = vmatprep.subr.mxu0 0.0
    %1428 = vmatpush2.xpose.msra.mxu0 0.0
    %1429 = vmatprep.mubr.f32.mxu0 0.0
    %1430 = vmatmul.mubr.f32.gmra.mxu0 %v1354
    %v1431 = vpop.f32.mrf.mxu0
    %v1432 = vadd.f32 0.0, %v1431
    %v1433 = vpop.f32.mrf.mxu0
    %1434 = vmatprep.mubr.f32.mxu0 0.0
    %1435 = vmatmul.mubr.f32.gmra.mxu0 %v1357
    %v1436 = vpop.f32.mrf.mxu0
    %v1437 = vadd.f32 0.0, %v1436
    %v1438 = vpop.f32.mrf.mxu0
    %1439 = vdwg.mxu0
    %v1440 = vmul.f32 %v1432, 0.35355338
    %v1441 = vmul.f32 %v1437, 0.35355338
    %v1442 = vadd.f32 %v1440, %v132
    %v1443 = vadd.f32 %v1441, %v133
    %v1444 = vsel %vm460, %v1442, -inf
    %1445 = vmax.xlane.f32.xlu0 %v1444
    %v1446 = vpop.xlane.xlu0 %1445
    %v1447 = vsel %vm460, %v1443, -inf
    %1448 = vmax.xlane.f32.xlu0 %v1447
    %v1449 = vpop.xlane.xlu0 %1448
    %v1450 = vsub.f32 %v1442, %v1446
    %v1451 = vsub.f32 %v1443, %v1449
    %v1452 = vmul.f32 %v1450, 1.442695
    %v1453 = vpow.pop %v1452
    %v1454 = vmul.f32 %v1451, 1.442695
    %v1455 = vpow.pop %v1454
    %v1456 = vsel %vm460, %v1453, 0.0
    %1457 = vadd.xlane.f32.xlu0 %v1456
    %v1458 = vpop.xlane.xlu0 %1457
    %v1459 = vsel %vm460, %v1455, 0.0
    %1460 = vadd.xlane.f32.xlu0 %v1459
    %v1461 = vpop.xlane.xlu0 %1460
    %v1462 = vrcp.pop %v1458
    %v1463 = vrcp.pop %v1461
    %v1464 = vmul.f32 %v1453, %v1462
    %v1465 = vmul.f32 %v1455, %v1463
    %v1467 = vsel %vm460, %v1464, 0
    %v1470 = vsel %vm460, %v1465, 0
    %1472 = vmatprep.subr.mxu0 0.0
    %1473 = vmatpush1.msra.mxu0 0.0
    %1474 = vmatprep.subr.mxu0 0.0
    %1475 = vmatpush1.msra.mxu0 0.0
    %1476 = vmatprep.subr.mxu0 0.0
    %1477 = vmatpush1.msra.mxu0 0.0
    %1478 = vmatprep.subr.mxu0 0.0
    %1479 = vmatpush1.msra.mxu0 0.0
    %1480 = vmatprep.subr.mxu0 0.0
    %1481 = vmatpush1.msra.mxu0 0.0
    %1482 = vmatprep.subr.mxu0 0.0
    %1483 = vmatpush1.msra.mxu0 0.0
    %1484 = vmatprep.subr.mxu0 0.0
    %1485 = vmatpush1.msra.mxu0 0.0
    %1486 = vmatprep.subr.mxu0 0.0
    %1487 = vmatpush1.msra.mxu0 0.0
    %1488 = vmatprep.subr.mxu0 0.0
    %1489 = vmatpush1.msra.mxu0 0.0
    %1490 = vmatprep.subr.mxu0 0.0
    %1491 = vmatpush1.msra.mxu0 0.0
    %1492 = vmatprep.subr.mxu0 0.0
    %1493 = vmatpush1.msra.mxu0 0.0
    %1494 = vmatprep.subr.mxu0 0.0
    %1495 = vmatpush1.msra.mxu0 0.0
    %1496 = vmatprep.subr.mxu0 0.0
    %1497 = vmatpush1.msra.mxu0 0.0
    %1498 = vmatprep.subr.mxu0 0.0
    %1499 = vmatpush1.msra.mxu0 0.0
    %1500 = vmatprep.subr.mxu0 0.0
    %1501 = vmatpush1.msra.mxu0 %v1350
    %1502 = vmatprep.subr.mxu0 0.0
    %1503 = vmatpush1.msra.mxu0 %v1345
    %1504 = vmatprep.subr.mxu0 0.0
    %1505 = vmatpush2.msra.mxu0 0.0
    %1506 = vmatprep.subr.mxu0 0.0
    %1507 = vmatpush2.msra.mxu0 0.0
    %1508 = vmatprep.subr.mxu0 0.0
    %1509 = vmatpush2.msra.mxu0 0.0
    %1510 = vmatprep.subr.mxu0 0.0
    %1511 = vmatpush2.msra.mxu0 0.0
    %1512 = vmatprep.subr.mxu0 0.0
    %1513 = vmatpush2.msra.mxu0 0.0
    %1514 = vmatprep.subr.mxu0 0.0
    %1515 = vmatpush2.msra.mxu0 0.0
    %1516 = vmatprep.subr.mxu0 0.0
    %1517 = vmatpush2.msra.mxu0 0.0
    %1518 = vmatprep.subr.mxu0 0.0
    %1519 = vmatpush2.msra.mxu0 0.0
    %1520 = vmatprep.subr.mxu0 0.0
    %1521 = vmatpush2.msra.mxu0 0.0
    %1522 = vmatprep.subr.mxu0 0.0
    %1523 = vmatpush2.msra.mxu0 0.0
    %1524 = vmatprep.subr.mxu0 0.0
    %1525 = vmatpush2.msra.mxu0 0.0
    %1526 = vmatprep.subr.mxu0 0.0
    %1527 = vmatpush2.msra.mxu0 0.0
    %1528 = vmatprep.subr.mxu0 0.0
    %1529 = vmatpush2.msra.mxu0 0.0
    %1530 = vmatprep.subr.mxu0 0.0
    %1531 = vmatpush2.msra.mxu0 0.0
    %1532 = vmatprep.subr.mxu0 0.0
    %1533 = vmatpush2.msra.mxu0 0.0
    %1534 = vmatprep.subr.mxu0 0.0
    %1535 = vmatpush2.msra.mxu0 0.0
    %1536 = vmatprep.mubr.f32.mxu0 0.0
    %1537 = vmatmul.mubr.f32.gmra.mxu0 %v1467
    %v1538 = vpop.f32.mrf.mxu0
    %v1539 = vadd.f32 0.0, %v1538
    %v1540 = vpop.f32.mrf.mxu0
    %1541 = vmatprep.mubr.f32.mxu0 0.0
    %1542 = vmatmul.mubr.f32.gmra.mxu0 %v1470
    %v1543 = vpop.f32.mrf.mxu0
    %v1544 = vadd.f32 0.0, %v1543
    %v1545 = vpop.f32.mrf.mxu0
    %1546 = vdwg.mxu0
    %1547 = vrot.lane.b32.xlu0 %v1195, 120
    %v1548 = vpop.permute.xlu0 %1547
    %1549 = vrot.lane.b32.xlu0 %v1200, 120
    %v1550 = vpop.permute.xlu0 %1549
    %1551 = vrot.lane.b32.xlu0 %v1270, 120
    %v1552 = vpop.permute.xlu0 %1551
    %1553 = vrot.lane.b32.xlu0 %v1275, 120
    %v1554 = vpop.permute.xlu0 %1553
    %v1555 = vsel %vm368, %v1548, 0
    %v1557 = vsel %vm368, %v1550, 0
    %v1559 = vsel %vm368, %v1552, 0
    %v1561 = vsel %vm368, %v1554, 0
    %1563 = vmatprep.subr.mxu0 0.0
    %1564 = vmatpush1.xpose.msra.mxu0 0.0
    %1565 = vmatprep.subr.mxu0 0.0
    %1566 = vmatpush1.xpose.msra.mxu0 0.0
    %1567 = vmatprep.subr.mxu0 0.0
    %1568 = vmatpush1.xpose.msra.mxu0 0.0
    %1569 = vmatprep.subr.mxu0 0.0
    %1570 = vmatpush1.xpose.msra.mxu0 0.0
    %1571 = vmatprep.subr.mxu0 0.0
    %1572 = vmatpush1.xpose.msra.mxu0 0.0
    %1573 = vmatprep.subr.mxu0 0.0
    %1574 = vmatpush1.xpose.msra.mxu0 0.0
    %1575 = vmatprep.subr.mxu0 0.0
    %1576 = vmatpush1.xpose.msra.mxu0 0.0
    %1577 = vmatprep.subr.mxu0 0.0
    %1578 = vmatpush1.xpose.msra.mxu0 0.0
    %1579 = vmatprep.subr.mxu0 0.0
    %1580 = vmatpush1.xpose.msra.mxu0 0.0
    %1581 = vmatprep.subr.mxu0 0.0
    %1582 = vmatpush1.xpose.msra.mxu0 0.0
    %1583 = vmatprep.subr.mxu0 0.0
    %1584 = vmatpush1.xpose.msra.mxu0 0.0
    %1585 = vmatprep.subr.mxu0 0.0
    %1586 = vmatpush1.xpose.msra.mxu0 0.0
    %1587 = vmatprep.subr.mxu0 0.0
    %1588 = vmatpush1.xpose.msra.mxu0 0.0
    %1589 = vmatprep.subr.mxu0 0.0
    %1590 = vmatpush1.xpose.msra.mxu0 0.0
    %1591 = vmatprep.subr.mxu0 0.0
    %1592 = vmatpush1.xpose.msra.mxu0 %v1561
    %1593 = vmatprep.subr.mxu0 0.0
    %1594 = vmatpush1.xpose.msra.mxu0 %v1559
    %1595 = vmatprep.subr.mxu0 0.0
    %1596 = vmatpush2.xpose.msra.mxu0 0.0
    %1597 = vmatprep.subr.mxu0 0.0
    %1598 = vmatpush2.xpose.msra.mxu0 0.0
    %1599 = vmatprep.subr.mxu0 0.0
    %1600 = vmatpush2.xpose.msra.mxu0 0.0
    %1601 = vmatprep.subr.mxu0 0.0
    %1602 = vmatpush2.xpose.msra.mxu0 0.0
    %1603 = vmatprep.subr.mxu0 0.0
    %1604 = vmatpush2.xpose.msra.mxu0 0.0
    %1605 = vmatprep.subr.mxu0 0.0
    %1606 = vmatpush2.xpose.msra.mxu0 0.0
    %1607 = vmatprep.subr.mxu0 0.0
    %1608 = vmatpush2.xpose.msra.mxu0 0.0
    %1609 = vmatprep.subr.mxu0 0.0
    %1610 = vmatpush2.xpose.msra.mxu0 0.0
    %1611 = vmatprep.subr.mxu0 0.0
    %1612 = vmatpush2.xpose.msra.mxu0 0.0
    %1613 = vmatprep.subr.mxu0 0.0
    %1614 = vmatpush2.xpose.msra.mxu0 0.0
    %1615 = vmatprep.subr.mxu0 0.0
    %1616 = vmatpush2.xpose.msra.mxu0 0.0
    %1617 = vmatprep.subr.mxu0 0.0
    %1618 = vmatpush2.xpose.msra.mxu0 0.0
    %1619 = vmatprep.subr.mxu0 0.0
    %1620 = vmatpush2.xpose.msra.mxu0 0.0
    %1621 = vmatprep.subr.mxu0 0.0
    %1622 = vmatpush2.xpose.msra.mxu0 0.0
    %1623 = vmatprep.subr.mxu0 0.0
    %1624 = vmatpush2.xpose.msra.mxu0 0.0
    %1625 = vmatprep.subr.mxu0 0.0
    %1626 = vmatpush2.xpose.msra.mxu0 0.0
    %1627 = vmatprep.mubr.f32.mxu0 0.0
    %1628 = vmatmul.mubr.f32.gmra.mxu0 %v1555
    %v1629 = vpop.f32.mrf.mxu0
    %v1630 = vadd.f32 0.0, %v1629
    %v1631 = vpop.f32.mrf.mxu0
    %1632 = vmatprep.mubr.f32.mxu0 0.0
    %1633 = vmatmul.mubr.f32.gmra.mxu0 %v1557
    %v1634 = vpop.f32.mrf.mxu0
    %v1635 = vadd.f32 0.0, %v1634
    %v1636 = vpop.f32.mrf.mxu0
    %1637 = vdwg.mxu0
    %v1638 = vmul.f32 %v1630, 0.35355338
    %v1639 = vmul.f32 %v1635, 0.35355338
    %v1640 = vadd.f32 %v1638, %v132
    %v1641 = vadd.f32 %v1639, %v133
    %v1642 = vsel %vm460, %v1640, -inf
    %1643 = vmax.xlane.f32.xlu0 %v1642
    %v1644 = vpop.xlane.xlu0 %1643
    %v1645 = vsel %vm460, %v1641, -inf
    %1646 = vmax.xlane.f32.xlu0 %v1645
    %v1647 = vpop.xlane.xlu0 %1646
    %v1648 = vsub.f32 %v1640, %v1644
    %v1649 = vsub.f32 %v1641, %v1647
    %v1650 = vmul.f32 %v1648, 1.442695
    %v1651 = vpow.pop %v1650
    %v1652 = vmul.f32 %v1649, 1.442695
    %v1653 = vpow.pop %v1652
    %v1654 = vsel %vm460, %v1651, 0.0
    %1655 = vadd.xlane.f32.xlu0 %v1654
    %v1656 = vpop.xlane.xlu0 %1655
    %v1657 = vsel %vm460, %v1653, 0.0
    %1658 = vadd.xlane.f32.xlu0 %v1657
    %v1659 = vpop.xlane.xlu0 %1658
    %v1660 = vrcp.pop %v1656
    %v1661 = vrcp.pop %v1659
    %v1662 = vmul.f32 %v1651, %v1660
    %v1663 = vmul.f32 %v1653, %v1661
    %1666 = vrot.lane.b32.xlu0 %v1345, 120
    %v1667 = vpop.permute.xlu0 %1666
    %1668 = vrot.lane.b32.xlu0 %v1350, 120
    %v1669 = vpop.permute.xlu0 %1668
    %v1673 = vsel %vm460, %v1662, 0
    %v1676 = vsel %vm460, %v1663, 0
    %1678 = vmatprep.subr.mxu0 0.0
    %1679 = vmatpush1.msra.mxu0 0.0
    %1680 = vmatprep.subr.mxu0 0.0
    %1681 = vmatpush1.msra.mxu0 0.0
    %1682 = vmatprep.subr.mxu0 0.0
    %1683 = vmatpush1.msra.mxu0 0.0
    %1684 = vmatprep.subr.mxu0 0.0
    %1685 = vmatpush1.msra.mxu0 0.0
    %1686 = vmatprep.subr.mxu0 0.0
    %1687 = vmatpush1.msra.mxu0 0.0
    %1688 = vmatprep.subr.mxu0 0.0
    %1689 = vmatpush1.msra.mxu0 0.0
    %1690 = vmatprep.subr.mxu0 0.0
    %1691 = vmatpush1.msra.mxu0 0.0
    %1692 = vmatprep.subr.mxu0 0.0
    %1693 = vmatpush1.msra.mxu0 0.0
    %1694 = vmatprep.subr.mxu0 0.0
    %1695 = vmatpush1.msra.mxu0 0.0
    %1696 = vmatprep.subr.mxu0 0.0
    %1697 = vmatpush1.msra.mxu0 0.0
    %1698 = vmatprep.subr.mxu0 0.0
    %1699 = vmatpush1.msra.mxu0 0.0
    %1700 = vmatprep.subr.mxu0 0.0
    %1701 = vmatpush1.msra.mxu0 0.0
    %1702 = vmatprep.subr.mxu0 0.0
    %1703 = vmatpush1.msra.mxu0 0.0
    %1704 = vmatprep.subr.mxu0 0.0
    %1705 = vmatpush1.msra.mxu0 0.0
    %1706 = vmatprep.subr.mxu0 0.0
    %1707 = vmatpush1.msra.mxu0 %v1669
    %1708 = vmatprep.subr.mxu0 0.0
    %1709 = vmatpush1.msra.mxu0 %v1667
    %1710 = vmatprep.subr.mxu0 0.0
    %1711 = vmatpush2.msra.mxu0 0.0
    %1712 = vmatprep.subr.mxu0 0.0
    %1713 = vmatpush2.msra.mxu0 0.0
    %1714 = vmatprep.subr.mxu0 0.0
    %1715 = vmatpush2.msra.mxu0 0.0
    %1716 = vmatprep.subr.mxu0 0.0
    %1717 = vmatpush2.msra.mxu0 0.0
    %1718 = vmatprep.subr.mxu0 0.0
    %1719 = vmatpush2.msra.mxu0 0.0
    %1720 = vmatprep.subr.mxu0 0.0
    %1721 = vmatpush2.msra.mxu0 0.0
    %1722 = vmatprep.subr.mxu0 0.0
    %1723 = vmatpush2.msra.mxu0 0.0
    %1724 = vmatprep.subr.mxu0 0.0
    %1725 = vmatpush2.msra.mxu0 0.0
    %1726 = vmatprep.subr.mxu0 0.0
    %1727 = vmatpush2.msra.mxu0 0.0
    %1728 = vmatprep.subr.mxu0 0.0
    %1729 = vmatpush2.msra.mxu0 0.0
    %1730 = vmatprep.subr.mxu0 0.0
    %1731 = vmatpush2.msra.mxu0 0.0
    %1732 = vmatprep.subr.mxu0 0.0
    %1733 = vmatpush2.msra.mxu0 0.0
    %1734 = vmatprep.subr.mxu0 0.0
    %1735 = vmatpush2.msra.mxu0 0.0
    %1736 = vmatprep.subr.mxu0 0.0
    %1737 = vmatpush2.msra.mxu0 0.0
    %1738 = vmatprep.subr.mxu0 0.0
    %1739 = vmatpush2.msra.mxu0 0.0
    %1740 = vmatprep.subr.mxu0 0.0
    %1741 = vmatpush2.msra.mxu0 0.0
    %1742 = vmatprep.mubr.f32.mxu0 0.0
    %1743 = vmatmul.mubr.f32.gmra.mxu0 %v1673
    %v1744 = vpop.f32.mrf.mxu0
    %v1745 = vadd.f32 0.0, %v1744
    %v1746 = vpop.f32.mrf.mxu0
    %1747 = vmatprep.mubr.f32.mxu0 0.0
    %1748 = vmatmul.mubr.f32.gmra.mxu0 %v1676
    %v1749 = vpop.f32.mrf.mxu0
    %v1750 = vadd.f32 0.0, %v1749
    %v1751 = vpop.f32.mrf.mxu0
    %1752 = vdwg.mxu0
    %1755 = vrot.lane.b32.xlu0 %v1745, 8
    %v1756 = vpop.permute.xlu0 %1755
    %1757 = vrot.lane.b32.xlu0 %v1750, 8
    %v1758 = vpop.permute.xlu0 %1757
    %1763 = vrot.lane.b32.xlu0 %v1539, 16
    %v1764 = vpop.permute.xlu0 %1763
    %1765 = vrot.lane.b32.xlu0 %v1544, 16
    %v1766 = vpop.permute.xlu0 %1765
    %1769 = vrot.lane.b32.xlu0 %v1745, 24
    %v1770 = vpop.permute.xlu0 %1769
    %1771 = vrot.lane.b32.xlu0 %v1750, 24
    %v1772 = vpop.permute.xlu0 %1771
    %v1775 = vsel %vm368, %v1539, %v1756
    %v1776 = vsel %vm368, %v1544, %v1758
    %v1777 = vsel %vm460, %v1775, %v1764
    %v1778 = vsel %vm460, %v1776, %v1766
    %v1779 = vsel %vm796, %v1777, %v1770
    %v1780 = vsel %vm796, %v1778, %v1772
    %1781 = vmatprep.subr.mxu0 0.0
    %1782 = vmatpush1.msra.mxu0 0.0
    %1783 = vmatprep.subr.mxu0 0.0
    %1784 = vmatpush1.msra.mxu0 0.0
    %1785 = vmatprep.subr.mxu0 0.0
    %1786 = vmatpush1.msra.mxu0 0.0
    %1787 = vmatprep.subr.mxu0 0.0
    %1788 = vmatpush1.msra.mxu0 0.0
    %1789 = vmatprep.subr.mxu0 0.0
    %1790 = vmatpush1.msra.mxu0 0.0
    %1791 = vmatprep.subr.mxu0 0.0
    %1792 = vmatpush1.msra.mxu0 0.0
    %1793 = vmatprep.subr.mxu0 0.0
    %1794 = vmatpush1.msra.mxu0 0.0
    %1795 = vmatprep.subr.mxu0 0.0
    %1796 = vmatpush1.msra.mxu0 0.0
    %1797 = vmatprep.subr.mxu0 0.0
    %1798 = vmatpush1.msra.mxu0 0.0
    %1799 = vmatprep.subr.mxu0 0.0
    %1800 = vmatpush1.msra.mxu0 0.0
    %1801 = vmatprep.subr.mxu0 0.0
    %1802 = vmatpush1.msra.mxu0 0.0
    %1803 = vmatprep.subr.mxu0 0.0
    %1804 = vmatpush1.msra.mxu0 0.0
    %1805 = vmatprep.subr.mxu0 0.0
    %1806 = vmatpush1.msra.mxu0 %v66
    %1807 = vmatprep.subr.mxu0 0.0
    %1808 = vmatpush1.msra.mxu0 %v65
    %1809 = vmatprep.subr.mxu0 0.0
    %1810 = vmatpush1.msra.mxu0 %v64
    %1811 = vmatprep.subr.mxu0 0.0
    %1812 = vmatpush1.msra.mxu0 %v63
    %1813 = vmatprep.subr.mxu0 0.0
    %1814 = vmatpush2.msra.mxu0 0.0
    %1815 = vmatprep.subr.mxu0 0.0
    %1816 = vmatpush2.msra.mxu0 0.0
    %1817 = vmatprep.subr.mxu0 0.0
    %1818 = vmatpush2.msra.mxu0 0.0
    %1819 = vmatprep.subr.mxu0 0.0
    %1820 = vmatpush2.msra.mxu0 0.0
    %1821 = vmatprep.subr.mxu0 0.0
    %1822 = vmatpush2.msra.mxu0 0.0
    %1823 = vmatprep.subr.mxu0 0.0
    %1824 = vmatpush2.msra.mxu0 0.0
    %1825 = vmatprep.subr.mxu0 0.0
    %1826 = vmatpush2.msra.mxu0 0.0
    %1827 = vmatprep.subr.mxu0 0.0
    %1828 = vmatpush2.msra.mxu0 0.0
    %1829 = vmatprep.subr.mxu0 0.0
    %1830 = vmatpush2.msra.mxu0 0.0
    %1831 = vmatprep.subr.mxu0 0.0
    %1832 = vmatpush2.msra.mxu0 0.0
    %1833 = vmatprep.subr.mxu0 0.0
    %1834 = vmatpush2.msra.mxu0 0.0
    %1835 = vmatprep.subr.mxu0 0.0
    %1836 = vmatpush2.msra.mxu0 0.0
    %1837 = vmatprep.subr.mxu0 0.0
    %1838 = vmatpush2.msra.mxu0 0.0
    %1839 = vmatprep.subr.mxu0 0.0
    %1840 = vmatpush2.msra.mxu0 0.0
    %1841 = vmatprep.subr.mxu0 0.0
    %1842 = vmatpush2.msra.mxu0 0.0
    %1843 = vmatprep.subr.mxu0 0.0
    %1844 = vmatpush2.msra.mxu0 0.0
    %1845 = vmatprep.mubr.f32.mxu0 0.0
    %1846 = vmatmul.mubr.f32.gmra.mxu0 %v1123
    %v1847 = vpop.f32.mrf.mxu0
    %v1848 = vadd.f32 %v84, %v1847
    %v1849 = vpop.f32.mrf.mxu0
    %1850 = vmatprep.mubr.f32.mxu0 0.0
    %1851 = vmatmul.mubr.f32.gmra.mxu0 %v1126
    %v1852 = vpop.f32.mrf.mxu0
    %v1853 = vadd.f32 %v84, %v1852
    %v1854 = vpop.f32.mrf.mxu0
    %1855 = vdwg.mxu0
    %v1856 = vadd.f32 %v1848, %v1779
    %v1857 = vadd.f32 %v1853, %v1780
    %v1858 = vsel %vm136, %v1856, 0.0
    %1859 = vadd.xlane.f32.xlu0 %v1858
    %v1860 = vpop.xlane.xlu0 %1859
    %v1861 = vsel %vm136, %v1857, 0.0
    %1862 = vadd.xlane.f32.xlu0 %v1861
    %v1863 = vpop.xlane.xlu0 %1862
    %v1864 = vmul.f32 %v1860, %v882
    %v1865 = vmul.f32 %v1863, %v882
    %v1866 = vsub.f32 %v1856, %v1864
    %v1867 = vsub.f32 %v1857, %v1865
    %v1868 = vmul.f32 %v1866, %v1866
    %v1869 = vmul.f32 %v1867, %v1867
    %v1870 = vsel %vm136, %v1868, 0.0
    %1871 = vadd.xlane.f32.xlu0 %v1870
    %v1872 = vpop.xlane.xlu0 %1871
    %v1873 = vsel %vm136, %v1869, 0.0
    %1874 = vadd.xlane.f32.xlu0 %v1873
    %v1875 = vpop.xlane.xlu0 %1874
    %v1876 = vmul.f32 %v1872, %v882
    %v1877 = vmul.f32 %v1875, %v882
    %v1878 = vadd.f32 %v1876, 1e-12
    %v1879 = vadd.f32 %v1877, 1e-12
    %v1880 = vrsqrt.pop %v1878
    %v1881 = vrsqrt.pop %v1879
    %v1882 = vmul.f32 %v1866, %v1880
    %v1883 = vmul.f32 %v1867, %v1881
    %v1884 = vmul.f32 %v105, %v1882
    %v1885 = vmul.f32 %v105, %v1883
    %v1886 = vadd.f32 %v1884, %v112
    %v1887 = vadd.f32 %v1885, %v112
    %v1889 = vsel %vm136, %v1886, 0
    %v1892 = vsel %vm136, %v1887, 0
    %1894 = vmatprep.subr.mxu0 0.0
    %1895 = vmatpush1.msra.mxu0 0.0
    %1896 = vmatprep.subr.mxu0 0.0
    %1897 = vmatpush1.msra.mxu0 0.0
    %1898 = vmatprep.subr.mxu0 0.0
    %1899 = vmatpush1.msra.mxu0 0.0
    %1900 = vmatprep.subr.mxu0 0.0
    %1901 = vmatpush1.msra.mxu0 0.0
    %1902 = vmatprep.subr.mxu0 0.0
    %1903 = vmatpush1.msra.mxu0 0.0
    %1904 = vmatprep.subr.mxu0 0.0
    %1905 = vmatpush1.msra.mxu0 0.0
    %1906 = vmatprep.subr.mxu0 0.0
    %1907 = vmatpush1.msra.mxu0 0.0
    %1908 = vmatprep.subr.mxu0 0.0
    %1909 = vmatpush1.msra.mxu0 0.0
    %1910 = vmatprep.subr.mxu0 0.0
    %1911 = vmatpush1.msra.mxu0 0.0
    %1912 = vmatprep.subr.mxu0 0.0
    %1913 = vmatpush1.msra.mxu0 0.0
    %1914 = vmatprep.subr.mxu0 0.0
    %1915 = vmatpush1.msra.mxu0 0.0
    %1916 = vmatprep.subr.mxu0 0.0
    %1917 = vmatpush1.msra.mxu0 0.0
    %1918 = vmatprep.subr.mxu0 0.0
    %1919 = vmatpush1.msra.mxu0 %v70
    %1920 = vmatprep.subr.mxu0 0.0
    %1921 = vmatpush1.msra.mxu0 %v69
    %1922 = vmatprep.subr.mxu0 0.0
    %1923 = vmatpush1.msra.mxu0 %v68
    %1924 = vmatprep.subr.mxu0 0.0
    %1925 = vmatpush1.msra.mxu0 %v67
    %1926 = vmatprep.subr.mxu0 0.0
    %1927 = vmatpush2.msra.mxu0 0.0
    %1928 = vmatprep.subr.mxu0 0.0
    %1929 = vmatpush2.msra.mxu0 0.0
    %1930 = vmatprep.subr.mxu0 0.0
    %1931 = vmatpush2.msra.mxu0 0.0
    %1932 = vmatprep.subr.mxu0 0.0
    %1933 = vmatpush2.msra.mxu0 0.0
    %1934 = vmatprep.subr.mxu0 0.0
    %1935 = vmatpush2.msra.mxu0 0.0
    %1936 = vmatprep.subr.mxu0 0.0
    %1937 = vmatpush2.msra.mxu0 0.0
    %1938 = vmatprep.subr.mxu0 0.0
    %1939 = vmatpush2.msra.mxu0 0.0
    %1940 = vmatprep.subr.mxu0 0.0
    %1941 = vmatpush2.msra.mxu0 0.0
    %1942 = vmatprep.subr.mxu0 0.0
    %1943 = vmatpush2.msra.mxu0 0.0
    %1944 = vmatprep.subr.mxu0 0.0
    %1945 = vmatpush2.msra.mxu0 0.0
    %1946 = vmatprep.subr.mxu0 0.0
    %1947 = vmatpush2.msra.mxu0 0.0
    %1948 = vmatprep.subr.mxu0 0.0
    %1949 = vmatpush2.msra.mxu0 0.0
    %1950 = vmatprep.subr.mxu0 0.0
    %1951 = vmatpush2.msra.mxu0 0.0
    %1952 = vmatprep.subr.mxu0 0.0
    %1953 = vmatpush2.msra.mxu0 0.0
    %1954 = vmatprep.subr.mxu0 0.0
    %1955 = vmatpush2.msra.mxu0 0.0
    %1956 = vmatprep.subr.mxu0 0.0
    %1957 = vmatpush2.msra.mxu0 0.0
    %1958 = vmatprep.mubr.f32.mxu0 0.0
    %1959 = vmatmul.mubr.f32.gmra.mxu0 %v1889
    %v1960 = vpop.f32.mrf.mxu0
    %v1961 = vadd.f32 %v91, %v1960
    %v1962 = vpop.f32.mrf.mxu0
    %1963 = vmatprep.mubr.f32.mxu0 0.0
    %1964 = vmatmul.mubr.f32.gmra.mxu0 %v1892
    %v1965 = vpop.f32.mrf.mxu0
    %v1966 = vadd.f32 %v91, %v1965
    %v1967 = vpop.f32.mrf.mxu0
    %1968 = vdwg.mxu0
    %v1969 = vmul.f32 %v1961, 0.5
    %v1970 = vmul.f32 %v1966, 0.5
    %v1971 = vmul.f32 %v1961, 0.044715
    %v1972 = vmul.f32 %v1966, 0.044715
    %v1973 = vmul.f32 %v1971, %v1961
    %v1974 = vmul.f32 %v1972, %v1966
    %v1975 = vmul.f32 %v1973, %v1961
    %v1976 = vmul.f32 %v1974, %v1966
    %v1977 = vadd.f32 %v1961, %v1975
    %v1978 = vadd.f32 %v1966, %v1976
    %v1979 = vmul.f32 %v1977, 0.7978846
    %v1980 = vmul.f32 %v1978, 0.7978846
    %v1981 = vtanh.pop %v1979
    %v1982 = vtanh.pop %v1980
    %v1983 = vadd.f32 %v1981, 1.0
    %v1984 = vadd.f32 %v1982, 1.0
    %v1985 = vmul.f32 %v1969, %v1983
    %v1986 = vmul.f32 %v1970, %v1984
    %v1988 = vsel %vm1006, %v1985, 0
    %v1991 = vsel %vm1006, %v1986, 0
    %1993 = vmatprep.subr.mxu0 0.0
    %1994 = vmatpush1.msra.mxu0 0.0
    %1995 = vmatprep.subr.mxu0 0.0
    %1996 = vmatpush1.msra.mxu0 0.0
    %1997 = vmatprep.subr.mxu0 0.0
    %1998 = vmatpush1.msra.mxu0 0.0
    %1999 = vmatprep.subr.mxu0 0.0
    %2000 = vmatpush1.msra.mxu0 0.0
    %2001 = vmatprep.subr.mxu0 0.0
    %2002 = vmatpush1.msra.mxu0 0.0
    %2003 = vmatprep.subr.mxu0 0.0
    %2004 = vmatpush1.msra.mxu0 0.0
    %2005 = vmatprep.subr.mxu0 0.0
    %2006 = vmatpush1.msra.mxu0 0.0
    %2007 = vmatprep.subr.mxu0 0.0
    %2008 = vmatpush1.msra.mxu0 0.0
    %2009 = vmatprep.subr.mxu0 0.0
    %2010 = vmatpush1.msra.mxu0 %v78
    %2011 = vmatprep.subr.mxu0 0.0
    %2012 = vmatpush1.msra.mxu0 %v77
    %2013 = vmatprep.subr.mxu0 0.0
    %2014 = vmatpush1.msra.mxu0 %v76
    %2015 = vmatprep.subr.mxu0 0.0
    %2016 = vmatpush1.msra.mxu0 %v75
    %2017 = vmatprep.subr.mxu0 0.0
    %2018 = vmatpush1.msra.mxu0 %v74
    %2019 = vmatprep.subr.mxu0 0.0
    %2020 = vmatpush1.msra.mxu0 %v73
    %2021 = vmatprep.subr.mxu0 0.0
    %2022 = vmatpush1.msra.mxu0 %v72
    %2023 = vmatprep.subr.mxu0 0.0
    %2024 = vmatpush1.msra.mxu0 %v71
    %2025 = vmatprep.subr.mxu0 0.0
    %2026 = vmatpush2.msra.mxu0 0.0
    %2027 = vmatprep.subr.mxu0 0.0
    %2028 = vmatpush2.msra.mxu0 0.0
    %2029 = vmatprep.subr.mxu0 0.0
    %2030 = vmatpush2.msra.mxu0 0.0
    %2031 = vmatprep.subr.mxu0 0.0
    %2032 = vmatpush2.msra.mxu0 0.0
    %2033 = vmatprep.subr.mxu0 0.0
    %2034 = vmatpush2.msra.mxu0 0.0
    %2035 = vmatprep.subr.mxu0 0.0
    %2036 = vmatpush2.msra.mxu0 0.0
    %2037 = vmatprep.subr.mxu0 0.0
    %2038 = vmatpush2.msra.mxu0 0.0
    %2039 = vmatprep.subr.mxu0 0.0
    %2040 = vmatpush2.msra.mxu0 0.0
    %2041 = vmatprep.subr.mxu0 0.0
    %2042 = vmatpush2.msra.mxu0 0.0
    %2043 = vmatprep.subr.mxu0 0.0
    %2044 = vmatpush2.msra.mxu0 0.0
    %2045 = vmatprep.subr.mxu0 0.0
    %2046 = vmatpush2.msra.mxu0 0.0
    %2047 = vmatprep.subr.mxu0 0.0
    %2048 = vmatpush2.msra.mxu0 0.0
    %2049 = vmatprep.subr.mxu0 0.0
    %2050 = vmatpush2.msra.mxu0 0.0
    %2051 = vmatprep.subr.mxu0 0.0
    %2052 = vmatpush2.msra.mxu0 0.0
    %2053 = vmatprep.subr.mxu0 0.0
    %2054 = vmatpush2.msra.mxu0 0.0
    %2055 = vmatprep.subr.mxu0 0.0
    %2056 = vmatpush2.msra.mxu0 0.0
    %2057 = vmatprep.mubr.f32.mxu0 0.0
    %2058 = vmatmul.mubr.f32.gmra.mxu0 %v1988
    %v2059 = vpop.f32.mrf.mxu0
    %v2060 = vadd.f32 %v98, %v2059
    %v2061 = vpop.f32.mrf.mxu0
    %2062 = vmatprep.mubr.f32.mxu0 0.0
    %2063 = vmatmul.mubr.f32.gmra.mxu0 %v1991
    %v2064 = vpop.f32.mrf.mxu0
    %v2065 = vadd.f32 %v98, %v2064
    %v2066 = vpop.f32.mrf.mxu0
    %2067 = vdwg.mxu0
    %v2068 = vadd.f32 %v2060, %v1886
    %v2069 = vadd.f32 %v2065, %v1887
    %v2070 = vsel %vm136, %v2068, 0.0
    %2071 = vadd.xlane.f32.xlu0 %v2070
    %v2072 = vpop.xlane.xlu0 %2071
    %v2073 = vsel %vm136, %v2069, 0.0
    %2074 = vadd.xlane.f32.xlu0 %v2073
    %v2075 = vpop.xlane.xlu0 %2074
    %v2076 = vmul.f32 %v2072, %v882
    %v2077 = vmul.f32 %v2075, %v882
    %v2078 = vsub.f32 %v2068, %v2076
    %v2079 = vsub.f32 %v2069, %v2077
    %v2080 = vmul.f32 %v2078, %v2078
    %v2081 = vmul.f32 %v2079, %v2079
    %v2082 = vsel %vm136, %v2080, 0.0
    %2083 = vadd.xlane.f32.xlu0 %v2082
    %v2084 = vpop.xlane.xlu0 %2083
    %v2085 = vsel %vm136, %v2081, 0.0
    %2086 = vadd.xlane.f32.xlu0 %v2085
    %v2087 = vpop.xlane.xlu0 %2086
    %v2088 = vmul.f32 %v2084, %v882
    %v2089 = vmul.f32 %v2087, %v882
    %v2090 = vadd.f32 %v2088, 1e-12
    %v2091 = vadd.f32 %v2089, 1e-12
    %v2092 = vrsqrt.pop %v2090
    %v2093 = vrsqrt.pop %v2091
    %v2094 = vmul.f32 %v2078, %v2092
    %v2095 = vmul.f32 %v2079, %v2093
    %v2096 = vmul.f32 %v119, %v2094
    %v2097 = vmul.f32 %v119, %v2095
    %v2098 = vadd.f32 %v2096, %v126
    %v2099 = vadd.f32 %v2097, %v126
    %s2100 = scalar_lea.vmem [#allocation2], 16
    %2101 = vst.msk [vmem:[%s2100] sm:$0xff] %vm136, %v2098
    %2102 = vst.msk [vmem:[%s2100 + $0x8] sm:$0xff] %vm136, %v2099
    // Predicated region
    $region62: #{tpu_custom_call.1} parent=1 // pred_check
      _
    $region63: #{tpu_custom_call.1} parent=1 // pred_check_branch
      %2104 = sbr.rel (0) target = $region65
    $region64: #{tpu_custom_call.1} parent=1 // pred_region
      %s2106 = ssub.s32 512, 512
      %2107 = vsyncadd [#allocation3], %s2106
      %s2108 = sshll.u32 [#allocation2], 4
      %s2109 = int_to_ptr.vmem [resolvable:$true] %s2108
      %2114 = dma.vmem_to_hbm [thread:$0]  %s2109, 512, %s15, [#allocation3], 128, 128, 8
    $region65: #{tpu_custom_call.1} parent=1 // pred_fallthru
      _
    // Predicated region
    $region66: #{tpu_custom_call.1} parent=1 // pred_check
      _
    $region67: #{tpu_custom_call.1} parent=1 // pred_check_branch
      %2116 = sbr.rel (0) target = $region69
    $region68: #{tpu_custom_call.1} parent=1 // pred_region
      %2117 = dma.done [#allocation3], 512
    $region69: #{tpu_custom_call.1} parent=1 // pred_fallthru
      _
    %2118 = vsyncpa [#allocation3], 1

</llo_original>
